<compile_context>
chip_gen: v7x
topology: tpu7x:2x2x1
jax: 0.10.0
libtpu: 0.0.40
codegen_flags: <defaults>
</compile_context>

<pallas_src>
import jax
import jax.numpy as jnp
from jax.experimental import pallas as pl
from jax.experimental.pallas import tpu as pltpu


# ---------------------------------------------------------------------------
# Pallas kernel: fused bidirectional-LSTM-last-step, grid=(2,) over direction
# ---------------------------------------------------------------------------

def simnet_lstm_kernel(x_ref, w_ih_ref, w_hh_ref, b_ref, out_ref, gx_ref):
    """Grid step i selects the LSTM direction (0 = forward, 1 = backward).

    x_ref    : (T*B, D)  time-major rows (row = t*B + b); resident both steps
    w_ih_ref : (D, 4H)   input->gate weights of the current direction
    w_hh_ref : (H, 4H)   forward-direction hidden->gate weights (step 0 only)
    b_ref    : (1, 4H)   b_ih + b_hh of the current direction
    out_ref  : (B, H)    this direction's half of outputs[:, -1, :]
    gx_ref   : (T*B,4H)  VMEM scratch for the hoisted forward projection
    """
    TB, _ = x_ref.shape
    H = w_hh_ref.shape[0]
    B = out_ref.shape[0]
    T = TB // B

    def cell(gates, c_prev):
        # PyTorch gate order (i, f, g, o) along the last axis.
        i_g = jax.nn.sigmoid(gates[:, 0 * H:1 * H])
        f_g = jax.nn.sigmoid(gates[:, 1 * H:2 * H])
        g_g = jnp.tanh(gates[:, 2 * H:3 * H])
        o_g = jax.nn.sigmoid(gates[:, 3 * H:4 * H])
        c_new = f_g * c_prev + i_g * g_g
        h_new = o_g * jnp.tanh(c_new)
        return h_new, c_new

    direction = pl.program_id(0)

    @pl.when(direction == 0)
    def _forward():
        # Hoisted input projection for the forward direction, staged through
        # VMEM scratch so only one timestep's (B, 4H) block of gate pre-acts
        # is vreg-live at a time inside the serial recurrence.
        gx_ref[...] = (
            jnp.dot(x_ref[...], w_ih_ref[...],
                    preferred_element_type=jnp.float32) + b_ref[...])

        h = jnp.zeros((B, H), jnp.float32)
        c = jnp.zeros((B, H), jnp.float32)
        for t in range(T):                          # static unroll, T == 6
            # Only the recurrent h @ W_hh matmul stays inside the loop; W_hh
            # is referenced through its ref (streamed from VMEM, not held as
            # a 64-vreg live value across the unrolled recurrence).
            gates = gx_ref[pl.ds(t * B, B), :] + jnp.dot(
                h, w_hh_ref[...], preferred_element_type=jnp.float32)
            h, c = cell(gates, c)
        out_ref[...] = h.astype(out_ref.dtype)

    @pl.when(direction == 1)
    def _backward_last():
        # Reverse-direction output at position T-1 == one backward step on
        # x_{T-1} from (h0, c0) = 0: the h0 @ W_hh_b and f*c0 terms are
        # exactly zero, so only x_{T-1} is projected and W_hh_b is unneeded.
        gates = (
            jnp.dot(x_ref[pl.ds((T - 1) * B, B), :], w_ih_ref[...],
                    preferred_element_type=jnp.float32) + b_ref[...])
        h_b, _ = cell(gates, jnp.zeros((B, H), jnp.float32))
        out_ref[...] = h_b.astype(out_ref.dtype)


# ---------------------------------------------------------------------------
# Wrappers
# ---------------------------------------------------------------------------

def _run_simnet_lstm(x_tbd, w_ih_cat, w_hh_f, b_cat):
    T, B, D = x_tbd.shape
    H = w_hh_f.shape[0]
    # Collapse to (T*B, D) in the wrapper (time-major rows) so the kernel sees
    # a clean 2-D block — no in-kernel reshape / relayout risk.
    x2d = x_tbd.reshape(T * B, D)

    flops = (2 * T * B * D * 4 * H        # forward input projection
             + 2 * B * D * 4 * H          # backward projection of x_{T-1}
             + 2 * T * B * H * 4 * H)     # recurrent matmuls
    transcendentals = 5 * (T + 1) * B * H
    bytes_accessed = 4 * (T * B * D + D * 8 * H + H * 4 * H
                          + 8 * H + B * 2 * H)

    return pl.pallas_call(
        simnet_lstm_kernel,
        out_shape=jax.ShapeDtypeStruct((B, 2 * H), jnp.float32),
        grid_spec=pltpu.PrefetchScalarGridSpec(
            num_scalar_prefetch=0,
            grid=(2,),
            in_specs=[
                pl.BlockSpec((T * B, D), lambda i: (0, 0)),      # x (resident)
                pl.BlockSpec((D, 4 * H), lambda i: (0, i)),      # W_ih per dir
                pl.BlockSpec((H, 4 * H), lambda i: (0, 0)),      # W_hh fwd
                pl.BlockSpec((1, 4 * H), lambda i: (0, i)),      # bias per dir
            ],
            out_specs=pl.BlockSpec((B, H), lambda i: (0, i)),    # out half
            scratch_shapes=[pltpu.VMEM((T * B, 4 * H), jnp.float32)],
        ),
        compiler_params=pltpu.CompilerParams(
            dimension_semantics=("arbitrary",)),
        cost_estimate=pl.CostEstimate(
            flops=flops, transcendentals=transcendentals,
            bytes_accessed=bytes_accessed),
    )(x2d, w_ih_cat, w_hh_f, b_cat)


@jax.jit
def simnet_forward(inp, kparams):
    """SimNet eval-phase forward.

    inp: (B, T, D) float32 feature sequence (batch_first, as in PyTorch).
    Returns (B, num_classes) logits.
    """
    # (B, T, D) -> (T, B, D): time-major so the (T*B, D) collapse keeps B on
    # full 8-row sublane tiles. Under jit this is one small fused copy.
    x_tbd = jnp.transpose(inp, (1, 0, 2))
    h_cat = _run_simnet_lstm(
        x_tbd, kparams["w_ih_cat"], kparams["w_hh_f"], kparams["b_cat"])
    # Final 2-wide projection stays in XLA: writing a (B, 2) tile from the
    # kernel would force a lane-sparse masked store for no benefit.
    return h_cat @ kparams["w_fc"] + kparams["b_fc"][0]


def prepare_kernel_params(params):
    """Pack canonical (PyTorch-like) params into the kernel layout, once."""
    return {
        "w_ih_cat": jnp.concatenate([params["w_ih_f"], params["w_ih_b"]], axis=1),
        "b_cat": jnp.concatenate([params["b_f"], params["b_b"]], axis=1),
        "w_hh_f": params["w_hh_f"],
        "w_fc": params["w_fc"],
        "b_fc": params["b_fc"],
    }


# ---------------------------------------------------------------------------
# Pure-JAX reference (full bidirectional LSTM, for verification)
# ---------------------------------------------------------------------------

def _lstm_ref_dir(x_btd, w_ih, w_hh, b):
    B, T, D = x_btd.shape
    H = w_hh.shape[0]

    def step(carry, xt):
        h, c = carry
        gates = xt @ w_ih + h @ w_hh + b[0]
        i = jax.nn.sigmoid(gates[:, 0 * H:1 * H])
        f = jax.nn.sigmoid(gates[:, 1 * H:2 * H])
        g = jnp.tanh(gates[:, 2 * H:3 * H])
        o = jax.nn.sigmoid(gates[:, 3 * H:4 * H])
        c = f * c + i * g
        h = o * jnp.tanh(c)
        return (h, c), h

    init = (jnp.zeros((B, H), jnp.float32), jnp.zeros((B, H), jnp.float32))
    _, hs = jax.lax.scan(step, init, jnp.transpose(x_btd, (1, 0, 2)))
    return jnp.transpose(hs, (1, 0, 2))  # (B, T, H)


def simnet_forward_ref(inp, params):
    hs_f = _lstm_ref_dir(inp, params["w_ih_f"], params["w_hh_f"], params["b_f"])
    hs_b = _lstm_ref_dir(inp[:, ::-1, :], params["w_ih_b"], params["w_hh_b"],
                         params["b_b"])[:, ::-1, :]
    out_last = jnp.concatenate([hs_f[:, -1, :], hs_b[:, -1, :]], axis=-1)
    return out_last @ params["w_fc"] + params["b_fc"][0]


# ---------------------------------------------------------------------------
# Parameter init (deterministic, PyTorch-like shapes)
# ---------------------------------------------------------------------------

def init_params(key, input_size, hidden_size, num_classes):
    ks = jax.random.split(key, 10)
    s = 1.0 / jnp.sqrt(hidden_size)

    def u(k, shape):
        return jax.random.uniform(k, shape, jnp.float32, -s, s)

    D, H, C = input_size, hidden_size, num_classes
    s_fc = 1.0 / jnp.sqrt(2 * H)
    # PyTorch stores weight_ih_l0 as (4H, D); we keep the transposed (D, 4H),
    # gate order (i, f, g, o) along the last axis.
    return {
        "w_ih_f": u(ks[0], (D, 4 * H)),
        "w_hh_f": u(ks[1], (H, 4 * H)),
        "b_f": u(ks[2], (1, 4 * H)) + u(ks[3], (1, 4 * H)),   # b_ih + b_hh
        "w_ih_b": u(ks[4], (D, 4 * H)),
        "w_hh_b": u(ks[5], (H, 4 * H)),                       # ref only
        "b_b": u(ks[6], (1, 4 * H)) + u(ks[7], (1, 4 * H)),
        "w_fc": jax.random.uniform(ks[8], (2 * H, C), jnp.float32, -s_fc, s_fc),
        "b_fc": jax.random.uniform(ks[9], (1, C), jnp.float32, -s_fc, s_fc),
    }


# ---------------------------------------------------------------------------
# Main
# ---------------------------------------------------------------------------

if __name__ == "__main__":
    # Small shapes consistent with the module's eval path (sequence_length=6).
    B, T, D, H, C = 8, 6, 256, 128, 2

    key = jax.random.PRNGKey(0)
    k_inp, k_par = jax.random.split(key)
    inp = jax.random.normal(k_inp, (B, T, D), jnp.float32)
    params = init_params(k_par, D, H, C)
    kparams = prepare_kernel_params(params)

    out = simnet_forward(inp, kparams)
    out = jax.block_until_ready(out)

    ref = simnet_forward_ref(inp, params)
    assert out.shape == (B, C), out.shape
    assert jnp.allclose(out, ref, atol=1e-4, rtol=1e-4), (
        "mismatch vs reference: max abs err = "
        f"{float(jnp.max(jnp.abs(out - ref)))}")

    print("KERNEL_OK")
</pallas_src>

<mosaic_0001>
module attributes {stable_mosaic.version = 11 : i64} {
  func.func @simnet_lstm_kernel(%arg0: i32, %arg1: memref<48x256xf32, #tpu.memory_space<vmem>>, %arg2: memref<256x512xf32, #tpu.memory_space<vmem>>, %arg3: memref<128x512xf32, #tpu.memory_space<vmem>>, %arg4: memref<1x512xf32, #tpu.memory_space<vmem>>, %arg5: memref<8x128xf32, #tpu.memory_space<vmem>>, %arg6: memref<48x512xf32, #tpu.memory_space<vmem>>) attributes {dimension_semantics = [#tpu.dimension_semantics<arbitrary>], iteration_bounds = array<i64: 2>, scalar_prefetch = 0 : i64, scratch_operands = 1 : i64, tpu.core_type = #tpu.core_type<tc>, window_params = [{pipeline_mode = #tpu.pipeline_mode<synchronous>, transform_indices = @transform_0, window_bounds = array<i64: 48, 256>}, {transform_indices = @transform_1, window_bounds = array<i64: 256, 512>}, {pipeline_mode = #tpu.pipeline_mode<synchronous>, transform_indices = @transform_2, window_bounds = array<i64: 128, 512>}, {transform_indices = @transform_3, window_bounds = array<i64: 1, 512>}, {transform_indices = @transform_4, window_bounds = array<i64: 8, 128>}]} {
    %c0_i32 = arith.constant 0 : i32
    %0 = arith.cmpi eq, %arg0, %c0_i32 : i32
    %1 = arith.extui %0 : i1 to i32
    %c0_i32_0 = arith.constant 0 : i32
    %2 = arith.cmpi ne, %1, %c0_i32_0 : i32
    scf.if %2 {
      %c0 = arith.constant 0 : index
      %c0_2 = arith.constant 0 : index
      %6 = vector.load %arg1[%c0, %c0_2] : memref<48x256xf32, #tpu.memory_space<vmem>>, vector<48x256xf32>
      %c0_3 = arith.constant 0 : index
      %c0_4 = arith.constant 0 : index
      %7 = vector.load %arg2[%c0_3, %c0_4] : memref<256x512xf32, #tpu.memory_space<vmem>>, vector<256x512xf32>
      %cst = arith.constant dense<0.000000e+00> : vector<48x512xf32>
      %8 = tpu.matmul %6, %7, %cst {dimension_numbers = #tpu.dot_dimension_numbers<[1], [0], [0], [1], [0, 0, 1, 1], [], []>} : vector<48x256xf32>, vector<256x512xf32>, vector<48x512xf32> -> vector<48x512xf32>
      %c0_5 = arith.constant 0 : index
      %c0_6 = arith.constant 0 : index
      %9 = vector.load %arg4[%c0_5, %c0_6] : memref<1x512xf32, #tpu.memory_space<vmem>>, vector<1x512xf32>
      %10 = vector.broadcast %9 : vector<1x512xf32> to vector<48x512xf32>
      %11 = arith.addf %8, %10 : vector<48x512xf32>
      %c0_7 = arith.constant 0 : index
      %c0_8 = arith.constant 0 : index
      %12 = vector.load %arg6[%c0_7, %c0_8] : memref<48x512xf32, #tpu.memory_space<vmem>>, vector<48x512xf32>
      tpu.vector_store %arg6[%c0_7, %c0_8], %11 {strides = array<i32>} : memref<48x512xf32, #tpu.memory_space<vmem>>, vector<48x512xf32>,
      %cst_9 = arith.constant 0.000000e+00 : f32
      %13 = vector.broadcast %cst_9 : f32 to vector<8x128xf32>
      %cst_10 = arith.constant 0.000000e+00 : f32
      %14 = vector.broadcast %cst_10 : f32 to vector<8x128xf32>
      %c0_11 = arith.constant 0 : index
      %c0_12 = arith.constant 0 : index
      %15 = vector.load %arg6[%c0_11, %c0_12] : memref<48x512xf32, #tpu.memory_space<vmem>>, vector<8x512xf32>
      %c0_13 = arith.constant 0 : index
      %c0_14 = arith.constant 0 : index
      %16 = vector.load %arg3[%c0_13, %c0_14] : memref<128x512xf32, #tpu.memory_space<vmem>>, vector<128x512xf32>
      %cst_15 = arith.constant dense<0.000000e+00> : vector<8x512xf32>
      %17 = tpu.matmul %13, %16, %cst_15 {dimension_numbers = #tpu.dot_dimension_numbers<[1], [0], [0], [1], [0, 0, 1, 1], [], []>} : vector<8x128xf32>, vector<128x512xf32>, vector<8x512xf32> -> vector<8x512xf32>
      %18 = arith.addf %15, %17 : vector<8x512xf32>
      %19 = vector.extract_strided_slice %18 {offsets = [0, 0], sizes = [8, 128], strides = [1, 1]} : vector<8x512xf32> to vector<8x128xf32>
      %20 = arith.negf %19 : vector<8x128xf32>
      %21 = math.exp %20 : vector<8x128xf32>
      %cst_16 = arith.constant 1.000000e+00 : f32
      %22 = vector.broadcast %cst_16 : f32 to vector<8x128xf32>
      %23 = arith.addf %22, %21 : vector<8x128xf32>
      %24 = arith.divf %22, %23 : vector<8x128xf32>
      %25 = vector.extract_strided_slice %18 {offsets = [0, 128], sizes = [8, 128], strides = [1, 1]} : vector<8x512xf32> to vector<8x128xf32>
      %26 = arith.negf %25 : vector<8x128xf32>
      %27 = math.exp %26 : vector<8x128xf32>
      %cst_17 = arith.constant 1.000000e+00 : f32
      %28 = vector.broadcast %cst_17 : f32 to vector<8x128xf32>
      %29 = arith.addf %28, %27 : vector<8x128xf32>
      %30 = arith.divf %28, %29 : vector<8x128xf32>
      %31 = vector.extract_strided_slice %18 {offsets = [0, 256], sizes = [8, 128], strides = [1, 1]} : vector<8x512xf32> to vector<8x128xf32>
      %32 = math.tanh %31 : vector<8x128xf32>
      %33 = vector.extract_strided_slice %18 {offsets = [0, 384], sizes = [8, 128], strides = [1, 1]} : vector<8x512xf32> to vector<8x128xf32>
      %34 = arith.negf %33 : vector<8x128xf32>
      %35 = math.exp %34 : vector<8x128xf32>
      %cst_18 = arith.constant 1.000000e+00 : f32
      %36 = vector.broadcast %cst_18 : f32 to vector<8x128xf32>
      %37 = arith.addf %36, %35 : vector<8x128xf32>
      %38 = arith.divf %36, %37 : vector<8x128xf32>
      %39 = arith.mulf %30, %14 : vector<8x128xf32>
      %40 = arith.mulf %24, %32 : vector<8x128xf32>
      %41 = arith.addf %39, %40 : vector<8x128xf32>
      %42 = math.tanh %41 : vector<8x128xf32>
      %43 = arith.mulf %38, %42 : vector<8x128xf32>
      %c8 = arith.constant 8 : index
      %c0_19 = arith.constant 0 : index
      %44 = vector.load %arg6[%c8, %c0_19] : memref<48x512xf32, #tpu.memory_space<vmem>>, vector<8x512xf32>
      %c0_20 = arith.constant 0 : index
      %c0_21 = arith.constant 0 : index
      %45 = vector.load %arg3[%c0_20, %c0_21] : memref<128x512xf32, #tpu.memory_space<vmem>>, vector<128x512xf32>
      %cst_22 = arith.constant dense<0.000000e+00> : vector<8x512xf32>
      %46 = tpu.matmul %43, %45, %cst_22 {dimension_numbers = #tpu.dot_dimension_numbers<[1], [0], [0], [1], [0, 0, 1, 1], [], []>} : vector<8x128xf32>, vector<128x512xf32>, vector<8x512xf32> -> vector<8x512xf32>
      %47 = arith.addf %44, %46 : vector<8x512xf32>
      %48 = vector.extract_strided_slice %47 {offsets = [0, 0], sizes = [8, 128], strides = [1, 1]} : vector<8x512xf32> to vector<8x128xf32>
      %49 = arith.negf %48 : vector<8x128xf32>
      %50 = math.exp %49 : vector<8x128xf32>
      %cst_23 = arith.constant 1.000000e+00 : f32
      %51 = vector.broadcast %cst_23 : f32 to vector<8x128xf32>
      %52 = arith.addf %51, %50 : vector<8x128xf32>
      %53 = arith.divf %51, %52 : vector<8x128xf32>
      %54 = vector.extract_strided_slice %47 {offsets = [0, 128], sizes = [8, 128], strides = [1, 1]} : vector<8x512xf32> to vector<8x128xf32>
      %55 = arith.negf %54 : vector<8x128xf32>
      %56 = math.exp %55 : vector<8x128xf32>
      %cst_24 = arith.constant 1.000000e+00 : f32
      %57 = vector.broadcast %cst_24 : f32 to vector<8x128xf32>
      %58 = arith.addf %57, %56 : vector<8x128xf32>
      %59 = arith.divf %57, %58 : vector<8x128xf32>
      %60 = vector.extract_strided_slice %47 {offsets = [0, 256], sizes = [8, 128], strides = [1, 1]} : vector<8x512xf32> to vector<8x128xf32>
      %61 = math.tanh %60 : vector<8x128xf32>
      %62 = vector.extract_strided_slice %47 {offsets = [0, 384], sizes = [8, 128], strides = [1, 1]} : vector<8x512xf32> to vector<8x128xf32>
      %63 = arith.negf %62 : vector<8x128xf32>
      %64 = math.exp %63 : vector<8x128xf32>
      %cst_25 = arith.constant 1.000000e+00 : f32
      %65 = vector.broadcast %cst_25 : f32 to vector<8x128xf32>
      %66 = arith.addf %65, %64 : vector<8x128xf32>
      %67 = arith.divf %65, %66 : vector<8x128xf32>
      %68 = arith.mulf %59, %41 : vector<8x128xf32>
      %69 = arith.mulf %53, %61 : vector<8x128xf32>
      %70 = arith.addf %68, %69 : vector<8x128xf32>
      %71 = math.tanh %70 : vector<8x128xf32>
      %72 = arith.mulf %67, %71 : vector<8x128xf32>
      %c16 = arith.constant 16 : index
      %c0_26 = arith.constant 0 : index
      %73 = vector.load %arg6[%c16, %c0_26] : memref<48x512xf32, #tpu.memory_space<vmem>>, vector<8x512xf32>
      %c0_27 = arith.constant 0 : index
      %c0_28 = arith.constant 0 : index
      %74 = vector.load %arg3[%c0_27, %c0_28] : memref<128x512xf32, #tpu.memory_space<vmem>>, vector<128x512xf32>
      %cst_29 = arith.constant dense<0.000000e+00> : vector<8x512xf32>
      %75 = tpu.matmul %72, %74, %cst_29 {dimension_numbers = #tpu.dot_dimension_numbers<[1], [0], [0], [1], [0, 0, 1, 1], [], []>} : vector<8x128xf32>, vector<128x512xf32>, vector<8x512xf32> -> vector<8x512xf32>
      %76 = arith.addf %73, %75 : vector<8x512xf32>
      %77 = vector.extract_strided_slice %76 {offsets = [0, 0], sizes = [8, 128], strides = [1, 1]} : vector<8x512xf32> to vector<8x128xf32>
      %78 = arith.negf %77 : vector<8x128xf32>
      %79 = math.exp %78 : vector<8x128xf32>
      %cst_30 = arith.constant 1.000000e+00 : f32
      %80 = vector.broadcast %cst_30 : f32 to vector<8x128xf32>
      %81 = arith.addf %80, %79 : vector<8x128xf32>
      %82 = arith.divf %80, %81 : vector<8x128xf32>
      %83 = vector.extract_strided_slice %76 {offsets = [0, 128], sizes = [8, 128], strides = [1, 1]} : vector<8x512xf32> to vector<8x128xf32>
      %84 = arith.negf %83 : vector<8x128xf32>
      %85 = math.exp %84 : vector<8x128xf32>
      %cst_31 = arith.constant 1.000000e+00 : f32
      %86 = vector.broadcast %cst_31 : f32 to vector<8x128xf32>
      %87 = arith.addf %86, %85 : vector<8x128xf32>
      %88 = arith.divf %86, %87 : vector<8x128xf32>
      %89 = vector.extract_strided_slice %76 {offsets = [0, 256], sizes = [8, 128], strides = [1, 1]} : vector<8x512xf32> to vector<8x128xf32>
      %90 = math.tanh %89 : vector<8x128xf32>
      %91 = vector.extract_strided_slice %76 {offsets = [0, 384], sizes = [8, 128], strides = [1, 1]} : vector<8x512xf32> to vector<8x128xf32>
      %92 = arith.negf %91 : vector<8x128xf32>
      %93 = math.exp %92 : vector<8x128xf32>
      %cst_32 = arith.constant 1.000000e+00 : f32
      %94 = vector.broadcast %cst_32 : f32 to vector<8x128xf32>
      %95 = arith.addf %94, %93 : vector<8x128xf32>
      %96 = arith.divf %94, %95 : vector<8x128xf32>
      %97 = arith.mulf %88, %70 : vector<8x128xf32>
      %98 = arith.mulf %82, %90 : vector<8x128xf32>
      %99 = arith.addf %97, %98 : vector<8x128xf32>
      %100 = math.tanh %99 : vector<8x128xf32>
      %101 = arith.mulf %96, %100 : vector<8x128xf32>
      %c24 = arith.constant 24 : index
      %c0_33 = arith.constant 0 : index
      %102 = vector.load %arg6[%c24, %c0_33] : memref<48x512xf32, #tpu.memory_space<vmem>>, vector<8x512xf32>
      %c0_34 = arith.constant 0 : index
      %c0_35 = arith.constant 0 : index
      %103 = vector.load %arg3[%c0_34, %c0_35] : memref<128x512xf32, #tpu.memory_space<vmem>>, vector<128x512xf32>
      %cst_36 = arith.constant dense<0.000000e+00> : vector<8x512xf32>
      %104 = tpu.matmul %101, %103, %cst_36 {dimension_numbers = #tpu.dot_dimension_numbers<[1], [0], [0], [1], [0, 0, 1, 1], [], []>} : vector<8x128xf32>, vector<128x512xf32>, vector<8x512xf32> -> vector<8x512xf32>
      %105 = arith.addf %102, %104 : vector<8x512xf32>
      %106 = vector.extract_strided_slice %105 {offsets = [0, 0], sizes = [8, 128], strides = [1, 1]} : vector<8x512xf32> to vector<8x128xf32>
      %107 = arith.negf %106 : vector<8x128xf32>
      %108 = math.exp %107 : vector<8x128xf32>
      %cst_37 = arith.constant 1.000000e+00 : f32
      %109 = vector.broadcast %cst_37 : f32 to vector<8x128xf32>
      %110 = arith.addf %109, %108 : vector<8x128xf32>
      %111 = arith.divf %109, %110 : vector<8x128xf32>
      %112 = vector.extract_strided_slice %105 {offsets = [0, 128], sizes = [8, 128], strides = [1, 1]} : vector<8x512xf32> to vector<8x128xf32>
      %113 = arith.negf %112 : vector<8x128xf32>
      %114 = math.exp %113 : vector<8x128xf32>
      %cst_38 = arith.constant 1.000000e+00 : f32
      %115 = vector.broadcast %cst_38 : f32 to vector<8x128xf32>
      %116 = arith.addf %115, %114 : vector<8x128xf32>
      %117 = arith.divf %115, %116 : vector<8x128xf32>
      %118 = vector.extract_strided_slice %105 {offsets = [0, 256], sizes = [8, 128], strides = [1, 1]} : vector<8x512xf32> to vector<8x128xf32>
      %119 = math.tanh %118 : vector<8x128xf32>
      %120 = vector.extract_strided_slice %105 {offsets = [0, 384], sizes = [8, 128], strides = [1, 1]} : vector<8x512xf32> to vector<8x128xf32>
      %121 = arith.negf %120 : vector<8x128xf32>
      %122 = math.exp %121 : vector<8x128xf32>
      %cst_39 = arith.constant 1.000000e+00 : f32
      %123 = vector.broadcast %cst_39 : f32 to vector<8x128xf32>
      %124 = arith.addf %123, %122 : vector<8x128xf32>
      %125 = arith.divf %123, %124 : vector<8x128xf32>
      %126 = arith.mulf %117, %99 : vector<8x128xf32>
      %127 = arith.mulf %111, %119 : vector<8x128xf32>
      %128 = arith.addf %126, %127 : vector<8x128xf32>
      %129 = math.tanh %128 : vector<8x128xf32>
      %130 = arith.mulf %125, %129 : vector<8x128xf32>
      %c32 = arith.constant 32 : index
      %c0_40 = arith.constant 0 : index
      %131 = vector.load %arg6[%c32, %c0_40] : memref<48x512xf32, #tpu.memory_space<vmem>>, vector<8x512xf32>
      %c0_41 = arith.constant 0 : index
      %c0_42 = arith.constant 0 : index
      %132 = vector.load %arg3[%c0_41, %c0_42] : memref<128x512xf32, #tpu.memory_space<vmem>>, vector<128x512xf32>
      %cst_43 = arith.constant dense<0.000000e+00> : vector<8x512xf32>
      %133 = tpu.matmul %130, %132, %cst_43 {dimension_numbers = #tpu.dot_dimension_numbers<[1], [0], [0], [1], [0, 0, 1, 1], [], []>} : vector<8x128xf32>, vector<128x512xf32>, vector<8x512xf32> -> vector<8x512xf32>
      %134 = arith.addf %131, %133 : vector<8x512xf32>
      %135 = vector.extract_strided_slice %134 {offsets = [0, 0], sizes = [8, 128], strides = [1, 1]} : vector<8x512xf32> to vector<8x128xf32>
      %136 = arith.negf %135 : vector<8x128xf32>
      %137 = math.exp %136 : vector<8x128xf32>
      %cst_44 = arith.constant 1.000000e+00 : f32
      %138 = vector.broadcast %cst_44 : f32 to vector<8x128xf32>
      %139 = arith.addf %138, %137 : vector<8x128xf32>
      %140 = arith.divf %138, %139 : vector<8x128xf32>
      %141 = vector.extract_strided_slice %134 {offsets = [0, 128], sizes = [8, 128], strides = [1, 1]} : vector<8x512xf32> to vector<8x128xf32>
      %142 = arith.negf %141 : vector<8x128xf32>
      %143 = math.exp %142 : vector<8x128xf32>
      %cst_45 = arith.constant 1.000000e+00 : f32
      %144 = vector.broadcast %cst_45 : f32 to vector<8x128xf32>
      %145 = arith.addf %144, %143 : vector<8x128xf32>
      %146 = arith.divf %144, %145 : vector<8x128xf32>
      %147 = vector.extract_strided_slice %134 {offsets = [0, 256], sizes = [8, 128], strides = [1, 1]} : vector<8x512xf32> to vector<8x128xf32>
      %148 = math.tanh %147 : vector<8x128xf32>
      %149 = vector.extract_strided_slice %134 {offsets = [0, 384], sizes = [8, 128], strides = [1, 1]} : vector<8x512xf32> to vector<8x128xf32>
      %150 = arith.negf %149 : vector<8x128xf32>
      %151 = math.exp %150 : vector<8x128xf32>
      %cst_46 = arith.constant 1.000000e+00 : f32
      %152 = vector.broadcast %cst_46 : f32 to vector<8x128xf32>
      %153 = arith.addf %152, %151 : vector<8x128xf32>
      %154 = arith.divf %152, %153 : vector<8x128xf32>
      %155 = arith.mulf %146, %128 : vector<8x128xf32>
      %156 = arith.mulf %140, %148 : vector<8x128xf32>
      %157 = arith.addf %155, %156 : vector<8x128xf32>
      %158 = math.tanh %157 : vector<8x128xf32>
      %159 = arith.mulf %154, %158 : vector<8x128xf32>
      %c40 = arith.constant 40 : index
      %c0_47 = arith.constant 0 : index
      %160 = vector.load %arg6[%c40, %c0_47] : memref<48x512xf32, #tpu.memory_space<vmem>>, vector<8x512xf32>
      %c0_48 = arith.constant 0 : index
      %c0_49 = arith.constant 0 : index
      %161 = vector.load %arg3[%c0_48, %c0_49] : memref<128x512xf32, #tpu.memory_space<vmem>>, vector<128x512xf32>
      %cst_50 = arith.constant dense<0.000000e+00> : vector<8x512xf32>
      %162 = tpu.matmul %159, %161, %cst_50 {dimension_numbers = #tpu.dot_dimension_numbers<[1], [0], [0], [1], [0, 0, 1, 1], [], []>} : vector<8x128xf32>, vector<128x512xf32>, vector<8x512xf32> -> vector<8x512xf32>
      %163 = arith.addf %160, %162 : vector<8x512xf32>
      %164 = vector.extract_strided_slice %163 {offsets = [0, 0], sizes = [8, 128], strides = [1, 1]} : vector<8x512xf32> to vector<8x128xf32>
      %165 = arith.negf %164 : vector<8x128xf32>
      %166 = math.exp %165 : vector<8x128xf32>
      %cst_51 = arith.constant 1.000000e+00 : f32
      %167 = vector.broadcast %cst_51 : f32 to vector<8x128xf32>
      %168 = arith.addf %167, %166 : vector<8x128xf32>
      %169 = arith.divf %167, %168 : vector<8x128xf32>
      %170 = vector.extract_strided_slice %163 {offsets = [0, 128], sizes = [8, 128], strides = [1, 1]} : vector<8x512xf32> to vector<8x128xf32>
      %171 = arith.negf %170 : vector<8x128xf32>
      %172 = math.exp %171 : vector<8x128xf32>
      %cst_52 = arith.constant 1.000000e+00 : f32
      %173 = vector.broadcast %cst_52 : f32 to vector<8x128xf32>
      %174 = arith.addf %173, %172 : vector<8x128xf32>
      %175 = arith.divf %173, %174 : vector<8x128xf32>
      %176 = vector.extract_strided_slice %163 {offsets = [0, 256], sizes = [8, 128], strides = [1, 1]} : vector<8x512xf32> to vector<8x128xf32>
      %177 = math.tanh %176 : vector<8x128xf32>
      %178 = vector.extract_strided_slice %163 {offsets = [0, 384], sizes = [8, 128], strides = [1, 1]} : vector<8x512xf32> to vector<8x128xf32>
      %179 = arith.negf %178 : vector<8x128xf32>
      %180 = math.exp %179 : vector<8x128xf32>
      %cst_53 = arith.constant 1.000000e+00 : f32
      %181 = vector.broadcast %cst_53 : f32 to vector<8x128xf32>
      %182 = arith.addf %181, %180 : vector<8x128xf32>
      %183 = arith.divf %181, %182 : vector<8x128xf32>
      %184 = arith.mulf %175, %157 : vector<8x128xf32>
      %185 = arith.mulf %169, %177 : vector<8x128xf32>
      %186 = arith.addf %184, %185 : vector<8x128xf32>
      %187 = math.tanh %186 : vector<8x128xf32>
      %188 = arith.mulf %183, %187 : vector<8x128xf32>
      %c0_54 = arith.constant 0 : index
      %c0_55 = arith.constant 0 : index
      %189 = vector.load %arg5[%c0_54, %c0_55] : memref<8x128xf32, #tpu.memory_space<vmem>>, vector<8x128xf32>
      tpu.vector_store %arg5[%c0_54, %c0_55], %188 {strides = array<i32>} : memref<8x128xf32, #tpu.memory_space<vmem>>, vector<8x128xf32>,
    } else {
    }
    %c1_i32 = arith.constant 1 : i32
    %3 = arith.cmpi eq, %arg0, %c1_i32 : i32
    %4 = arith.extui %3 : i1 to i32
    %c0_i32_1 = arith.constant 0 : i32
    %5 = arith.cmpi ne, %4, %c0_i32_1 : i32
    scf.if %5 {
      %c40 = arith.constant 40 : index
      %c0 = arith.constant 0 : index
      %6 = vector.load %arg1[%c40, %c0] : memref<48x256xf32, #tpu.memory_space<vmem>>, vector<8x256xf32>
      %c0_2 = arith.constant 0 : index
      %c0_3 = arith.constant 0 : index
      %7 = vector.load %arg2[%c0_2, %c0_3] : memref<256x512xf32, #tpu.memory_space<vmem>>, vector<256x512xf32>
      %cst = arith.constant dense<0.000000e+00> : vector<8x512xf32>
      %8 = tpu.matmul %6, %7, %cst {dimension_numbers = #tpu.dot_dimension_numbers<[1], [0], [0], [1], [0, 0, 1, 1], [], []>} : vector<8x256xf32>, vector<256x512xf32>, vector<8x512xf32> -> vector<8x512xf32>
      %c0_4 = arith.constant 0 : index
      %c0_5 = arith.constant 0 : index
      %9 = vector.load %arg4[%c0_4, %c0_5] : memref<1x512xf32, #tpu.memory_space<vmem>>, vector<1x512xf32>
      %10 = vector.broadcast %9 : vector<1x512xf32> to vector<8x512xf32>
      %11 = arith.addf %8, %10 : vector<8x512xf32>
      %cst_6 = arith.constant 0.000000e+00 : f32
      %12 = vector.broadcast %cst_6 : f32 to vector<8x128xf32>
      %13 = vector.extract_strided_slice %11 {offsets = [0, 0], sizes = [8, 128], strides = [1, 1]} : vector<8x512xf32> to vector<8x128xf32>
      %14 = arith.negf %13 : vector<8x128xf32>
      %15 = math.exp %14 : vector<8x128xf32>
      %cst_7 = arith.constant 1.000000e+00 : f32
      %16 = vector.broadcast %cst_7 : f32 to vector<8x128xf32>
      %17 = arith.addf %16, %15 : vector<8x128xf32>
      %18 = arith.divf %16, %17 : vector<8x128xf32>
      %19 = vector.extract_strided_slice %11 {offsets = [0, 128], sizes = [8, 128], strides = [1, 1]} : vector<8x512xf32> to vector<8x128xf32>
      %20 = arith.negf %19 : vector<8x128xf32>
      %21 = math.exp %20 : vector<8x128xf32>
      %cst_8 = arith.constant 1.000000e+00 : f32
      %22 = vector.broadcast %cst_8 : f32 to vector<8x128xf32>
      %23 = arith.addf %22, %21 : vector<8x128xf32>
      %24 = arith.divf %22, %23 : vector<8x128xf32>
      %25 = vector.extract_strided_slice %11 {offsets = [0, 256], sizes = [8, 128], strides = [1, 1]} : vector<8x512xf32> to vector<8x128xf32>
      %26 = math.tanh %25 : vector<8x128xf32>
      %27 = vector.extract_strided_slice %11 {offsets = [0, 384], sizes = [8, 128], strides = [1, 1]} : vector<8x512xf32> to vector<8x128xf32>
      %28 = arith.negf %27 : vector<8x128xf32>
      %29 = math.exp %28 : vector<8x128xf32>
      %cst_9 = arith.constant 1.000000e+00 : f32
      %30 = vector.broadcast %cst_9 : f32 to vector<8x128xf32>
      %31 = arith.addf %30, %29 : vector<8x128xf32>
      %32 = arith.divf %30, %31 : vector<8x128xf32>
      %33 = arith.mulf %24, %12 : vector<8x128xf32>
      %34 = arith.mulf %18, %26 : vector<8x128xf32>
      %35 = arith.addf %33, %34 : vector<8x128xf32>
      %36 = math.tanh %35 : vector<8x128xf32>
      %37 = arith.mulf %32, %36 : vector<8x128xf32>
      %c0_10 = arith.constant 0 : index
      %c0_11 = arith.constant 0 : index
      %38 = vector.load %arg5[%c0_10, %c0_11] : memref<8x128xf32, #tpu.memory_space<vmem>>, vector<8x128xf32>
      tpu.vector_store %arg5[%c0_10, %c0_11], %37 {strides = array<i32>} : memref<8x128xf32, #tpu.memory_space<vmem>>, vector<8x128xf32>,
    } else {
    }
    return
  }
  func.func @transform_0(%arg0: i32) -> (i32, i32) {
    %c0_i32 = arith.constant 0 : i32
    %c0_i32_0 = arith.constant 0 : i32
    %c0_i32_1 = arith.constant 0 : i32
    return %c0_i32, %c0_i32_0 : i32, i32
  }
  func.func @transform_1(%arg0: i32) -> (i32, i32) {
    %c0_i32 = arith.constant 0 : i32
    %c0_i32_0 = arith.constant 0 : i32
    return %c0_i32, %arg0 : i32, i32
  }
  func.func @transform_2(%arg0: i32) -> (i32, i32) {
    %c0_i32 = arith.constant 0 : i32
    %c0_i32_0 = arith.constant 0 : i32
    %c0_i32_1 = arith.constant 0 : i32
    return %c0_i32, %c0_i32_0 : i32, i32
  }
  func.func @transform_3(%arg0: i32) -> (i32, i32) {
    %c0_i32 = arith.constant 0 : i32
    %c0_i32_0 = arith.constant 0 : i32
    return %c0_i32, %arg0 : i32, i32
  }
  func.func @transform_4(%arg0: i32) -> (i32, i32) {
    %c0_i32 = arith.constant 0 : i32
    %c0_i32_0 = arith.constant 0 : i32
    return %c0_i32, %arg0 : i32, i32
  }
}

</mosaic_0001>

<llo_original>
// kernel: simnet_forward.1
$region0: #{simnet_forward.1}
  #allocation0 [shape = 'u32[]', space=smem, size = 0x4, offset = 0x4, fixed_abs, tag = 'smem constant byte address 0x4 - core index']
  #allocation1 [shape = 'u32[144,128]{1,0:T(1,128)}', space=vmem, size = 0x12000, scoped, tag = 'internal scratch']
  #allocation2 [shape = 'f32[48,512]{1,0:T(8,128)}', space=vmem, size = 0x18000, scoped, tag = 'scratch operand']
  %s0 = inlined_call_operand.hbm [shape: f32[48,256], index: 0, kind: input, shape index: {}]
  %s1 = inlined_call_operand.hbm [shape: f32[256,1024], index: 1, kind: input, shape index: {}]
  %s2 = inlined_call_operand.hbm [shape: f32[128,512], index: 2, kind: input, shape index: {}]
  %s3 = inlined_call_operand.vmem [shape: f32[1,1024], index: 3, kind: input, shape index: {}]
  %s4 = inlined_call_operand.vmem [shape: f32[8,256], index: 4, kind: output, shape index: {}]
  %s5 = sld [smem:[#allocation0]]
  $region69: #{simnet_forward.1} parent=0
    _
  %s7 = ssub.s32 1, %s5
  %s8 = scalar_select 0, %s7, %s5
  $region1: #{simnet_forward.1} parent=0
    #allocation3 [shape = 'u8[49152]{0}', space=vmem, size = 0xc000, scoped, tag = 'input window, operand 0, single buffered']
    #allocation4 [shape = 's32[2]{0}', space=sflag, size = 0x8, scoped, tag = 'scoped memory for simnet_forward.1']
    #allocation5 [shape = 'u8[1048576]{0}', space=vmem, size = 0x100000, scoped, tag = 'input window, operand 1']
    #allocation6 [shape = 's32[2]{0}', space=sflag, size = 0x8, scoped, tag = 'scoped memory for simnet_forward.1']
    #allocation7 [shape = 'u8[262144]{0}', space=vmem, size = 0x40000, scoped, tag = 'input window, operand 2, single buffered']
    %9 = vsyncpa [#allocation4], 0
    %10 = vsyncpa [#allocation6], 0
    %s11 = scalar_lea.sflag [#allocation6], 1
    %12 = vsyncpa %s11, 0
    loop: start=0, step=1, limit=4
    $region2: #{simnet_forward.1} parent=1 // loop_pre_header
      _
    $region3: #{simnet_forward.1} parent=1 // loop_header
      %s14 = sphi 0, %s18
      %p15 = scmp.ge.s32.totalorder %s14, 4
      %s22 = sphi 0, %s22
      %s24 = sphi 0, %s22
      %s25 = sphi 0, %s24
      %s39 = sphi 0, %s25
      %s45 = sphi 0, %s47
      %s48 = sphi 0, %s45
      %s49 = sphi 0, %s48
      %s65 = sphi 0, %s49
      %s69 = sphi 0, %s69
      %s71 = sphi 0, %s69
      %s72 = sphi 0, %s71
      %s86 = sphi 0, %s72
      %s92 = sphi 0, %s94
      %s95 = sphi 0, %s92
      %s96 = sphi 0, %s95
      %s112 = sphi 0, %s96
      %s118 = sphi 0, %s120
      %s121 = sphi 0, %s118
      %s122 = sphi 0, %s121
      %s138 = sphi 0, %s122
    $region4: #{simnet_forward.1} parent=1 // loop_header_branch
      %17 = sbr.rel (%p15) target = $region8
    $region5: #{simnet_forward.1} parent=1 // loop_body
      %s19 = ssub.s32 %s14, 1
      %s20 = ssub.s32 %s14, 2
      %s21 = sadd.s32 %s14, 1
      %s23 = sadd.s32 %s22, 1
      %p26 = scmp.eq.s32.totalorder %s14, 1
      %p27 = scmp.ne.s32.totalorder %s22, %s24
      %p28 = scmp.eq.s32.totalorder %s14, 0
      %p29 = por %p27, %p28
      %p30 = scmp.ne.s32.totalorder %s22, %s24
      %p31 = scmp.eq.s32.totalorder %s19, 1
      %p32 = por %p30, %p31
      %p33 = scmp.ne.s32.totalorder %s24, %s25
      %p34 = scmp.eq.s32.totalorder %s19, 0
      %p35 = por %p33, %p34
      %p36 = scmp.ne.s32.totalorder %s24, %s25
      %p37 = scmp.eq.s32.totalorder %s20, 1
      %p38 = por %p36, %p37
      %p40 = scmp.ne.s32.totalorder %s25, %s39
      %p41 = scmp.eq.s32.totalorder %s20, 0
      %p42 = por %p40, %p41
      %s43 = ssub.s32 %s14, %s21
      %p44 = scmp.eq.s32.totalorder %s43, 0
      %s46 = sadd.s32 %s45, 1
      %s47 = scalar_select %p44, %s45, %s46
      %p50 = pneg %p44
      %p51 = scmp.eq.s32.totalorder %s14, 1
      %p52 = por %p50, %p51
      %p53 = scmp.ne.s32.totalorder %s45, %s48
      %p54 = scmp.eq.s32.totalorder %s14, 0
      %p55 = por %p53, %p54
      %p56 = scmp.ne.s32.totalorder %s45, %s48
      %p57 = scmp.eq.s32.totalorder %s19, 1
      %p58 = por %p56, %p57
      %p59 = scmp.ne.s32.totalorder %s48, %s49
      %p60 = scmp.eq.s32.totalorder %s19, 0
      %p61 = por %p59, %p60
      %p62 = scmp.ne.s32.totalorder %s48, %s49
      %p63 = scmp.eq.s32.totalorder %s20, 1
      %p64 = por %p62, %p63
      %p66 = scmp.ne.s32.totalorder %s49, %s65
      %p67 = scmp.eq.s32.totalorder %s20, 0
      %p68 = por %p66, %p67
      %s70 = sadd.s32 %s69, 1
      %p73 = scmp.eq.s32.totalorder %s14, 1
      %p74 = scmp.ne.s32.totalorder %s69, %s71
      %p75 = scmp.eq.s32.totalorder %s14, 0
      %p76 = por %p74, %p75
      %p77 = scmp.ne.s32.totalorder %s69, %s71
      %p78 = scmp.eq.s32.totalorder %s19, 1
      %p79 = por %p77, %p78
      %p80 = scmp.ne.s32.totalorder %s71, %s72
      %p81 = scmp.eq.s32.totalorder %s19, 0
      %p82 = por %p80, %p81
      %p83 = scmp.ne.s32.totalorder %s71, %s72
      %p84 = scmp.eq.s32.totalorder %s20, 1
      %p85 = por %p83, %p84
      %p87 = scmp.ne.s32.totalorder %s72, %s86
      %p88 = scmp.eq.s32.totalorder %s20, 0
      %p89 = por %p87, %p88
      %s90 = ssub.s32 %s14, %s21
      %p91 = scmp.eq.s32.totalorder %s90, 0
      %s93 = sadd.s32 %s92, 1
      %s94 = scalar_select %p91, %s92, %s93
      %p97 = pneg %p91
      %p98 = scmp.eq.s32.totalorder %s14, 1
      %p99 = por %p97, %p98
      %p100 = scmp.ne.s32.totalorder %s92, %s95
      %p101 = scmp.eq.s32.totalorder %s14, 0
      %p102 = por %p100, %p101
      %p103 = scmp.ne.s32.totalorder %s92, %s95
      %p104 = scmp.eq.s32.totalorder %s19, 1
      %p105 = por %p103, %p104
      %p106 = scmp.ne.s32.totalorder %s95, %s96
      %p107 = scmp.eq.s32.totalorder %s19, 0
      %p108 = por %p106, %p107
      %p109 = scmp.ne.s32.totalorder %s95, %s96
      %p110 = scmp.eq.s32.totalorder %s20, 1
      %p111 = por %p109, %p110
      %p113 = scmp.ne.s32.totalorder %s96, %s112
      %p114 = scmp.eq.s32.totalorder %s20, 0
      %p115 = por %p113, %p114
      %s116 = ssub.s32 %s14, %s21
      %p117 = scmp.eq.s32.totalorder %s116, 0
      %s119 = sadd.s32 %s118, 1
      %s120 = scalar_select %p117, %s118, %s119
      %p123 = pneg %p117
      %p124 = scmp.eq.s32.totalorder %s14, 1
      %p125 = por %p123, %p124
      %p126 = scmp.ne.s32.totalorder %s118, %s121
      %p127 = scmp.eq.s32.totalorder %s14, 0
      %p128 = por %p126, %p127
      %p129 = scmp.ne.s32.totalorder %s118, %s121
      %p130 = scmp.eq.s32.totalorder %s19, 1
      %p131 = por %p129, %p130
      %p132 = scmp.ne.s32.totalorder %s121, %s122
      %p133 = scmp.eq.s32.totalorder %s19, 0
      %p134 = por %p132, %p133
      %p135 = scmp.ne.s32.totalorder %s121, %s122
      %p136 = scmp.eq.s32.totalorder %s20, 1
      %p137 = por %p135, %p136
      %p139 = scmp.ne.s32.totalorder %s122, %s138
      %p140 = scmp.eq.s32.totalorder %s20, 0
      %p141 = por %p139, %p140
      %p142 = scmp.le.s32.totalorder 1, %s14
      %p143 = scmp.lt.s32.totalorder %s14, 3
      %p144 = pnand %p142, %p143
      %p145 = pneg %p144
      // Predicated region
      $region9: #{simnet_forward.1} parent=5 // pred_check
        _
      $region10: #{simnet_forward.1} parent=5 // pred_check_branch
        %147 = sbr.rel (%p144) target = $region12
      $region11: #{simnet_forward.1} parent=5 // pred_region
        %s148 = ssub.s32 %s14, 1
        // Predicated region
        $region13: #{simnet_forward.1} parent=11 // pred_check
          %p149 = pneg %p35
        $region14: #{simnet_forward.1} parent=11 // pred_check_branch
          %151 = sbr.rel (%p149) target = $region16
        $region15: #{simnet_forward.1} parent=11 // pred_region
          %s153 = ssub.s32 1536, 1536
          %154 = vsyncadd [#allocation4], %s153
          %s155 = sshll.u32 [#allocation3], 4
          %s156 = int_to_ptr.vmem [resolvable:$true] %s155
          %161 = dma.hbm_to_vmem [thread:$0]  %s0, 1536, %s156, [#allocation4], 256, 256, 16
        $region16: #{simnet_forward.1} parent=11 // pred_fallthru
          _
        // Predicated region
        $region17: #{simnet_forward.1} parent=11 // pred_check
          %p162 = pneg %p82
        $region18: #{simnet_forward.1} parent=11 // pred_check_branch
          %164 = sbr.rel (%p162) target = $region20
        $region19: #{simnet_forward.1} parent=11 // pred_region
          %s166 = ssub.s32 8192, 8192
          %167 = vsyncadd [#allocation6], %s166
          %s168 = sshll.u32 [#allocation7], 4
          %s169 = int_to_ptr.vmem [resolvable:$true] %s168
          %174 = dma.hbm_to_vmem [thread:$0]  %s2, 8192, %s169, [#allocation6], 512, 512, 32
        $region20: #{simnet_forward.1} parent=11 // pred_fallthru
          _
      $region12: #{simnet_forward.1} parent=5 // pred_fallthru
        _
      %p175 = scmp.lt.s32.totalorder %s14, 2
      // Predicated region
      $region21: #{simnet_forward.1} parent=5 // pred_check
        %p176 = pneg %p175
      $region22: #{simnet_forward.1} parent=5 // pred_check_branch
        %178 = sbr.rel (%p176) target = $region24
      $region23: #{simnet_forward.1} parent=5 // pred_region
        // Predicated region
        $region25: #{simnet_forward.1} parent=23 // pred_check
          %p179 = pneg %p55
        $region26: #{simnet_forward.1} parent=23 // pred_check_branch
          %181 = sbr.rel (%p179) target = $region28
        $region27: #{simnet_forward.1} parent=23 // pred_region
          %s182 = sand.u32 %s14, 1
          %s183 = scalar_lea.sflag [#allocation6], %s182
          %s184 = sand.u32 %s45, 1
          %s185 = smul.addr %s184, 1024
          %s186 = scalar_lea.vmem [#allocation5], %s185
          %s187 = smul.u32 4, %s14
          %s189 = ssub.s32 16384, 16384
          %190 = vsyncadd %s183, %s189
          %s191 = smul.addr %s187, 128
          %s192 = scalar_lea.hbm %s1, %s191
          %s193 = sshll.u32 %s186, 4
          %s194 = int_to_ptr.vmem [resolvable:$true] %s193
          %199 = dma.hbm_to_vmem [thread:$0]  %s192, 16384, %s194, %s183, 1024, 512, 32
        $region28: #{simnet_forward.1} parent=23 // pred_fallthru
          _
        // Predicated region
        $region29: #{simnet_forward.1} parent=23 // pred_check
          %p200 = pneg %p102
        $region30: #{simnet_forward.1} parent=23 // pred_check_branch
          %202 = sbr.rel (%p200) target = $region32
        $region31: #{simnet_forward.1} parent=23 // pred_region
          %s203 = smul.u32 4, %s14
          %p204 = scmp.lt.s32.totalorder %s203, 7
          %s205 = scalar_select %p204, %s203, 7
          %s206 = scalar_lea.vmem %s3, %s205
          %s207 = smul.u32 4, %s14
        $region32: #{simnet_forward.1} parent=23 // pred_fallthru
          _
      $region24: #{simnet_forward.1} parent=5 // pred_fallthru
        _
      %p208 = scmp.le.s32.totalorder 1, %s14
      %p209 = scmp.lt.s32.totalorder %s14, 3
      %p210 = pnand %p208, %p209
      %p211 = pneg %p210
      // Predicated region
      $region33: #{simnet_forward.1} parent=5 // pred_check
        _
      $region34: #{simnet_forward.1} parent=5 // pred_check_branch
        %213 = sbr.rel (%p210) target = $region36
      $region35: #{simnet_forward.1} parent=5 // pred_region
        %s214 = ssub.s32 %s14, 1
        // Predicated region
        $region37: #{simnet_forward.1} parent=35 // pred_check
          %p215 = pneg %p35
        $region38: #{simnet_forward.1} parent=35 // pred_check_branch
          %217 = sbr.rel (%p215) target = $region40
        $region39: #{simnet_forward.1} parent=35 // pred_region
          %218 = dma.done [#allocation4], 1536
        $region40: #{simnet_forward.1} parent=35 // pred_fallthru
          _
        %s219 = sand.u32 %s19, 1
        %s220 = scalar_lea.sflag [#allocation6], %s219
        %s221 = sand.u32 %s48, 1
        %s222 = smul.addr %s221, 1024
        %s223 = scalar_lea.vmem [#allocation5], %s222
        // Predicated region
        $region41: #{simnet_forward.1} parent=35 // pred_check
          %p224 = pneg %p61
        $region42: #{simnet_forward.1} parent=35 // pred_check_branch
          %226 = sbr.rel (%p224) target = $region44
        $region43: #{simnet_forward.1} parent=35 // pred_region
          %227 = dma.done %s220, 16384
        $region44: #{simnet_forward.1} parent=35 // pred_fallthru
          _
        // Predicated region
        $region45: #{simnet_forward.1} parent=35 // pred_check
          %p228 = pneg %p82
        $region46: #{simnet_forward.1} parent=35 // pred_check_branch
          %230 = sbr.rel (%p228) target = $region48
        $region47: #{simnet_forward.1} parent=35 // pred_region
          %231 = dma.done [#allocation6], 8192
        $region48: #{simnet_forward.1} parent=35 // pred_fallthru
          _
        %p232 = pneg %p35
        %p233 = pneg %p32
        %s234 = sand.u32 %s19, 1
        %s235 = scalar_lea.sflag [#allocation6], %s234
        %s236 = sand.u32 %s48, 1
        %s237 = smul.addr %s236, 1024
        %s238 = scalar_lea.vmem [#allocation5], %s237
        %p239 = pneg %p61
        %p240 = pneg %p58
        %p241 = pneg %p82
        %p242 = pneg %p79
        %s243 = smul.u32 4, %s19
        %p244 = scmp.lt.s32.totalorder %s243, 7
        %s245 = scalar_select %p244, %s243, 7
        %s246 = scalar_lea.vmem %s3, %s245
        %p247 = pneg %p108
        %p248 = pneg %p105
        %p249 = pneg %p134
        %p250 = pneg %p131
        %p251 = scmp.lt.s32.totalorder %s19, 1
        %s252 = scalar_select %p251, %s19, 1
        %s253 = smul.addr %s252, 8
        %s254 = scalar_lea.vmem %s4, %s253
        %s255 = smul.u32 4, %s19
        %s256 = smul.u32 4, %s19
        %p257 = scmp.lt.s32.totalorder %s256, 7
        %s258 = scalar_select %p257, %s256, 7
        %s259 = scalar_lea.vmem %s3, %s258
        %s260 = smul.u32 4, %s19
        %p261 = scmp.lt.s32.totalorder %s19, 1
        %s262 = scalar_select %p261, %s19, 1
        %s263 = smul.addr %s262, 8
        %s264 = scalar_lea.vmem %s4, %s263
        %p265 = scmp.eq.s32.totalorder %s19, 0
        // Predicated region
        $region49: #{simnet_forward.1} parent=35 // pred_check
          %p266 = pneg %p265
        $region50: #{simnet_forward.1} parent=35 // pred_check_branch
          %268 = sbr.rel (%p266) target = $region52
        $region51: #{simnet_forward.1} parent=35 // pred_region
          %v269 = vld [vmem:[#allocation3] sm:$0xff]
          %v270 = vld [vmem:[#allocation3 + $0x8] sm:$0xff]
          %v271 = vld [vmem:[#allocation3 + $0x10] sm:$0xff]
          %v272 = vld [vmem:[#allocation3 + $0x18] sm:$0xff]
          %v273 = vld [vmem:[#allocation3 + $0x20] sm:$0xff]
          %v274 = vld [vmem:[#allocation3 + $0x28] sm:$0xff]
          %v275 = vld [vmem:[#allocation3 + $0x30] sm:$0xff]
          %v276 = vld [vmem:[#allocation3 + $0x38] sm:$0xff]
          %v277 = vld [vmem:[#allocation3 + $0x40] sm:$0xff]
          %v278 = vld [vmem:[#allocation3 + $0x48] sm:$0xff]
          %v279 = vld [vmem:[#allocation3 + $0x50] sm:$0xff]
          %v280 = vld [vmem:[#allocation3 + $0x58] sm:$0xff]
          %v281 = vld [vmem:[%s223] sm:$0xff]
          %v282 = vld [vmem:[%s223 + $0x8] sm:$0xff]
          %v283 = vld [vmem:[%s223 + $0x10] sm:$0xff]
          %v284 = vld [vmem:[%s223 + $0x18] sm:$0xff]
          %v285 = vld [vmem:[%s223 + $0x20] sm:$0xff]
          %v286 = vld [vmem:[%s223 + $0x28] sm:$0xff]
          %v287 = vld [vmem:[%s223 + $0x30] sm:$0xff]
          %v288 = vld [vmem:[%s223 + $0x38] sm:$0xff]
          %v289 = vld [vmem:[%s223 + $0x40] sm:$0xff]
          %v290 = vld [vmem:[%s223 + $0x48] sm:$0xff]
          %v291 = vld [vmem:[%s223 + $0x50] sm:$0xff]
          %v292 = vld [vmem:[%s223 + $0x58] sm:$0xff]
          %v293 = vld [vmem:[%s223 + $0x60] sm:$0xff]
          %v294 = vld [vmem:[%s223 + $0x68] sm:$0xff]
          %v295 = vld [vmem:[%s223 + $0x70] sm:$0xff]
          %v296 = vld [vmem:[%s223 + $0x78] sm:$0xff]
          %v297 = vld [vmem:[%s223 + $0x80] sm:$0xff]
          %v298 = vld [vmem:[%s223 + $0x88] sm:$0xff]
          %v299 = vld [vmem:[%s223 + $0x90] sm:$0xff]
          %v300 = vld [vmem:[%s223 + $0x98] sm:$0xff]
          %v301 = vld [vmem:[%s223 + $0xa0] sm:$0xff]
          %v302 = vld [vmem:[%s223 + $0xa8] sm:$0xff]
          %v303 = vld [vmem:[%s223 + $0xb0] sm:$0xff]
          %v304 = vld [vmem:[%s223 + $0xb8] sm:$0xff]
          %v305 = vld [vmem:[%s223 + $0xc0] sm:$0xff]
          %v306 = vld [vmem:[%s223 + $0xc8] sm:$0xff]
          %v307 = vld [vmem:[%s223 + $0xd0] sm:$0xff]
          %v308 = vld [vmem:[%s223 + $0xd8] sm:$0xff]
          %v309 = vld [vmem:[%s223 + $0xe0] sm:$0xff]
          %v310 = vld [vmem:[%s223 + $0xe8] sm:$0xff]
          %v311 = vld [vmem:[%s223 + $0xf0] sm:$0xff]
          %v312 = vld [vmem:[%s223 + $0xf8] sm:$0xff]
          %v313 = vld [vmem:[%s223 + $0x100] sm:$0xff]
          %v314 = vld [vmem:[%s223 + $0x108] sm:$0xff]
          %v315 = vld [vmem:[%s223 + $0x110] sm:$0xff]
          %v316 = vld [vmem:[%s223 + $0x118] sm:$0xff]
          %v317 = vld [vmem:[%s223 + $0x120] sm:$0xff]
          %v318 = vld [vmem:[%s223 + $0x128] sm:$0xff]
          %v319 = vld [vmem:[%s223 + $0x130] sm:$0xff]
          %v320 = vld [vmem:[%s223 + $0x138] sm:$0xff]
          %v321 = vld [vmem:[%s223 + $0x140] sm:$0xff]
          %v322 = vld [vmem:[%s223 + $0x148] sm:$0xff]
          %v323 = vld [vmem:[%s223 + $0x150] sm:$0xff]
          %v324 = vld [vmem:[%s223 + $0x158] sm:$0xff]
          %v325 = vld [vmem:[%s223 + $0x160] sm:$0xff]
          %v326 = vld [vmem:[%s223 + $0x168] sm:$0xff]
          %v327 = vld [vmem:[%s223 + $0x170] sm:$0xff]
          %v328 = vld [vmem:[%s223 + $0x178] sm:$0xff]
          %v329 = vld [vmem:[%s223 + $0x180] sm:$0xff]
          %v330 = vld [vmem:[%s223 + $0x188] sm:$0xff]
          %v331 = vld [vmem:[%s223 + $0x190] sm:$0xff]
          %v332 = vld [vmem:[%s223 + $0x198] sm:$0xff]
          %v333 = vld [vmem:[%s223 + $0x1a0] sm:$0xff]
          %v334 = vld [vmem:[%s223 + $0x1a8] sm:$0xff]
          %v335 = vld [vmem:[%s223 + $0x1b0] sm:$0xff]
          %v336 = vld [vmem:[%s223 + $0x1b8] sm:$0xff]
          %v337 = vld [vmem:[%s223 + $0x1c0] sm:$0xff]
          %v338 = vld [vmem:[%s223 + $0x1c8] sm:$0xff]
          %v339 = vld [vmem:[%s223 + $0x1d0] sm:$0xff]
          %v340 = vld [vmem:[%s223 + $0x1d8] sm:$0xff]
          %v341 = vld [vmem:[%s223 + $0x1e0] sm:$0xff]
          %v342 = vld [vmem:[%s223 + $0x1e8] sm:$0xff]
          %v343 = vld [vmem:[%s223 + $0x1f0] sm:$0xff]
          %v344 = vld [vmem:[%s223 + $0x1f8] sm:$0xff]
          %v345 = vld [vmem:[%s223 + $0x200] sm:$0xff]
          %v346 = vld [vmem:[%s223 + $0x208] sm:$0xff]
          %v347 = vld [vmem:[%s223 + $0x210] sm:$0xff]
          %v348 = vld [vmem:[%s223 + $0x218] sm:$0xff]
          %v349 = vld [vmem:[%s223 + $0x220] sm:$0xff]
          %v350 = vld [vmem:[%s223 + $0x228] sm:$0xff]
          %v351 = vld [vmem:[%s223 + $0x230] sm:$0xff]
          %v352 = vld [vmem:[%s223 + $0x238] sm:$0xff]
          %v353 = vld [vmem:[%s223 + $0x240] sm:$0xff]
          %v354 = vld [vmem:[%s223 + $0x248] sm:$0xff]
          %v355 = vld [vmem:[%s223 + $0x250] sm:$0xff]
          %v356 = vld [vmem:[%s223 + $0x258] sm:$0xff]
          %v357 = vld [vmem:[%s223 + $0x260] sm:$0xff]
          %v358 = vld [vmem:[%s223 + $0x268] sm:$0xff]
          %v359 = vld [vmem:[%s223 + $0x270] sm:$0xff]
          %v360 = vld [vmem:[%s223 + $0x278] sm:$0xff]
          %v361 = vld [vmem:[%s223 + $0x280] sm:$0xff]
          %v362 = vld [vmem:[%s223 + $0x288] sm:$0xff]
          %v363 = vld [vmem:[%s223 + $0x290] sm:$0xff]
          %v364 = vld [vmem:[%s223 + $0x298] sm:$0xff]
          %v365 = vld [vmem:[%s223 + $0x2a0] sm:$0xff]
          %v366 = vld [vmem:[%s223 + $0x2a8] sm:$0xff]
          %v367 = vld [vmem:[%s223 + $0x2b0] sm:$0xff]
          %v368 = vld [vmem:[%s223 + $0x2b8] sm:$0xff]
          %v369 = vld [vmem:[%s223 + $0x2c0] sm:$0xff]
          %v370 = vld [vmem:[%s223 + $0x2c8] sm:$0xff]
          %v371 = vld [vmem:[%s223 + $0x2d0] sm:$0xff]
          %v372 = vld [vmem:[%s223 + $0x2d8] sm:$0xff]
          %v373 = vld [vmem:[%s223 + $0x2e0] sm:$0xff]
          %v374 = vld [vmem:[%s223 + $0x2e8] sm:$0xff]
          %v375 = vld [vmem:[%s223 + $0x2f0] sm:$0xff]
          %v376 = vld [vmem:[%s223 + $0x2f8] sm:$0xff]
          %v377 = vld [vmem:[%s223 + $0x300] sm:$0xff]
          %v378 = vld [vmem:[%s223 + $0x308] sm:$0xff]
          %v379 = vld [vmem:[%s223 + $0x310] sm:$0xff]
          %v380 = vld [vmem:[%s223 + $0x318] sm:$0xff]
          %v381 = vld [vmem:[%s223 + $0x320] sm:$0xff]
          %v382 = vld [vmem:[%s223 + $0x328] sm:$0xff]
          %v383 = vld [vmem:[%s223 + $0x330] sm:$0xff]
          %v384 = vld [vmem:[%s223 + $0x338] sm:$0xff]
          %v385 = vld [vmem:[%s223 + $0x340] sm:$0xff]
          %v386 = vld [vmem:[%s223 + $0x348] sm:$0xff]
          %v387 = vld [vmem:[%s223 + $0x350] sm:$0xff]
          %v388 = vld [vmem:[%s223 + $0x358] sm:$0xff]
          %v389 = vld [vmem:[%s223 + $0x360] sm:$0xff]
          %v390 = vld [vmem:[%s223 + $0x368] sm:$0xff]
          %v391 = vld [vmem:[%s223 + $0x370] sm:$0xff]
          %v392 = vld [vmem:[%s223 + $0x378] sm:$0xff]
          %v393 = vld [vmem:[%s223 + $0x380] sm:$0xff]
          %v394 = vld [vmem:[%s223 + $0x388] sm:$0xff]
          %v395 = vld [vmem:[%s223 + $0x390] sm:$0xff]
          %v396 = vld [vmem:[%s223 + $0x398] sm:$0xff]
          %v397 = vld [vmem:[%s223 + $0x3a0] sm:$0xff]
          %v398 = vld [vmem:[%s223 + $0x3a8] sm:$0xff]
          %v399 = vld [vmem:[%s223 + $0x3b0] sm:$0xff]
          %v400 = vld [vmem:[%s223 + $0x3b8] sm:$0xff]
          %v401 = vld [vmem:[%s223 + $0x3c0] sm:$0xff]
          %v402 = vld [vmem:[%s223 + $0x3c8] sm:$0xff]
          %v403 = vld [vmem:[%s223 + $0x3d0] sm:$0xff]
          %v404 = vld [vmem:[%s223 + $0x3d8] sm:$0xff]
          %v405 = vld [vmem:[%s223 + $0x3e0] sm:$0xff]
          %v406 = vld [vmem:[%s223 + $0x3e8] sm:$0xff]
          %v407 = vld [vmem:[%s223 + $0x3f0] sm:$0xff]
          %v408 = vld [vmem:[%s223 + $0x3f8] sm:$0xff]
          %v409 = vld [vmem:[%s259] sm:$0xf]
          %v411 = vlaneseq
          %v412 = vshrl.u32 %v411, 7
          %v413 = vsub.s32 0, %v412
          %v414 = vrot.slane %v409, %v413
          %v415 = vlaneseq
          %v416 = vshrl.u32 %v415, 7
          %v417 = vsub.s32 1, %v416
          %v418 = vrot.slane %v409, %v417
          %v419 = vlaneseq
          %v420 = vshrl.u32 %v419, 7
          %v421 = vsub.s32 2, %v420
          %v422 = vrot.slane %v409, %v421
          %v423 = vlaneseq
          %v424 = vshrl.u32 %v423, 7
          %v425 = vsub.s32 3, %v424
          %v426 = vrot.slane %v409, %v425
          %431 = vmatprep.subr.mxu0 %v282
          %432 = vmatpush1.msra.mxu0 %v281
          %433 = vmatprep.subr.mxu0 %v286
          %434 = vmatpush1.msra.mxu0 %v285
          %435 = vmatprep.subr.mxu0 %v290
          %436 = vmatpush1.msra.mxu0 %v289
          %437 = vmatprep.subr.mxu0 %v294
          %438 = vmatpush1.msra.mxu0 %v293
          %439 = vmatprep.subr.mxu0 %v298
          %440 = vmatpush1.msra.mxu0 %v297
          %441 = vmatprep.subr.mxu0 %v302
          %442 = vmatpush1.msra.mxu0 %v301
          %443 = vmatprep.subr.mxu0 %v306
          %444 = vmatpush1.msra.mxu0 %v305
          %445 = vmatprep.subr.mxu0 %v310
          %446 = vmatpush1.msra.mxu0 %v309
          %447 = vmatprep.subr.mxu0 %v314
          %448 = vmatpush1.msra.mxu0 %v313
          %449 = vmatprep.subr.mxu0 %v318
          %450 = vmatpush1.msra.mxu0 %v317
          %451 = vmatprep.subr.mxu0 %v322
          %452 = vmatpush1.msra.mxu0 %v321
          %453 = vmatprep.subr.mxu0 %v326
          %454 = vmatpush1.msra.mxu0 %v325
          %455 = vmatprep.subr.mxu0 %v330
          %456 = vmatpush1.msra.mxu0 %v329
          %457 = vmatprep.subr.mxu0 %v334
          %458 = vmatpush1.msra.mxu0 %v333
          %459 = vmatprep.subr.mxu0 %v338
          %460 = vmatpush1.msra.mxu0 %v337
          %461 = vmatprep.subr.mxu0 %v342
          %462 = vmatpush1.msra.mxu0 %v341
          %463 = vmatprep.subr.mxu0 %v346
          %464 = vmatpush1.msra.mxu0 %v345
          %465 = vmatprep.subr.mxu0 %v350
          %466 = vmatpush1.msra.mxu0 %v349
          %467 = vmatprep.subr.mxu0 %v354
          %468 = vmatpush1.msra.mxu0 %v353
          %469 = vmatprep.subr.mxu0 %v358
          %470 = vmatpush1.msra.mxu0 %v357
          %471 = vmatprep.subr.mxu0 %v362
          %472 = vmatpush1.msra.mxu0 %v361
          %473 = vmatprep.subr.mxu0 %v366
          %474 = vmatpush1.msra.mxu0 %v365
          %475 = vmatprep.subr.mxu0 %v370
          %476 = vmatpush1.msra.mxu0 %v369
          %477 = vmatprep.subr.mxu0 %v374
          %478 = vmatpush1.msra.mxu0 %v373
          %479 = vmatprep.subr.mxu0 %v378
          %480 = vmatpush1.msra.mxu0 %v377
          %481 = vmatprep.subr.mxu0 %v382
          %482 = vmatpush1.msra.mxu0 %v381
          %483 = vmatprep.subr.mxu0 %v386
          %484 = vmatpush1.msra.mxu0 %v385
          %485 = vmatprep.subr.mxu0 %v390
          %486 = vmatpush1.msra.mxu0 %v389
          %487 = vmatprep.subr.mxu0 %v394
          %488 = vmatpush1.msra.mxu0 %v393
          %489 = vmatprep.subr.mxu0 %v398
          %490 = vmatpush1.msra.mxu0 %v397
          %491 = vmatprep.subr.mxu0 %v402
          %492 = vmatpush1.msra.mxu0 %v401
          %493 = vmatprep.subr.mxu0 %v406
          %494 = vmatpush1.msra.mxu0 %v405
          %495 = vmatprep.mubr.f32.mxu0 %v270
          %496 = vmatmul.mubr.f32.gmra.mrb[0].mxu0 %v269
          %v497 = vpop.f32.mrb[0].mxu0
          %v498 = vadd.f32 %v414, %v497
          %v499 = vpop.f32.mrb[0].mxu0
          %v500 = vadd.f32 %v418, %v499
          %501 = vmatprep.mubr.f32.mxu0 %v272
          %502 = vmatmul.mubr.f32.gmra.mrb[0].mxu0 %v271
          %v503 = vpop.f32.mrb[0].mxu0
          %v504 = vadd.f32 %v414, %v503
          %v505 = vpop.f32.mrb[0].mxu0
          %v506 = vadd.f32 %v418, %v505
          %507 = vmatprep.mubr.f32.mxu0 %v274
          %508 = vmatmul.mubr.f32.gmra.mrb[0].mxu0 %v273
          %v509 = vpop.f32.mrb[0].mxu0
          %v510 = vadd.f32 %v414, %v509
          %v511 = vpop.f32.mrb[0].mxu0
          %v512 = vadd.f32 %v418, %v511
          %513 = vmatprep.mubr.f32.mxu0 %v276
          %514 = vmatmul.mubr.f32.gmra.mrb[0].mxu0 %v275
          %v515 = vpop.f32.mrb[0].mxu0
          %v516 = vadd.f32 %v414, %v515
          %v517 = vpop.f32.mrb[0].mxu0
          %v518 = vadd.f32 %v418, %v517
          %519 = vmatprep.mubr.f32.mxu0 %v278
          %520 = vmatmul.mubr.f32.gmra.mrb[0].mxu0 %v277
          %v521 = vpop.f32.mrb[0].mxu0
          %v522 = vadd.f32 %v414, %v521
          %v523 = vpop.f32.mrb[0].mxu0
          %v524 = vadd.f32 %v418, %v523
          %525 = vmatprep.mubr.f32.mxu0 %v280
          %526 = vmatmul.mubr.f32.gmra.mrb[0].mxu0 %v279
          %v527 = vpop.f32.mrb[0].mxu0
          %v528 = vadd.f32 %v414, %v527
          %v529 = vpop.f32.mrb[0].mxu0
          %v530 = vadd.f32 %v418, %v529
          %531 = vdwg.mxu0
          %532 = vmatprep.subr.mxu0 %v284
          %533 = vmatpush1.msra.mxu0 %v283
          %534 = vmatprep.subr.mxu0 %v288
          %535 = vmatpush1.msra.mxu0 %v287
          %536 = vmatprep.subr.mxu0 %v292
          %537 = vmatpush1.msra.mxu0 %v291
          %538 = vmatprep.subr.mxu0 %v296
          %539 = vmatpush1.msra.mxu0 %v295
          %540 = vmatprep.subr.mxu0 %v300
          %541 = vmatpush1.msra.mxu0 %v299
          %542 = vmatprep.subr.mxu0 %v304
          %543 = vmatpush1.msra.mxu0 %v303
          %544 = vmatprep.subr.mxu0 %v308
          %545 = vmatpush1.msra.mxu0 %v307
          %546 = vmatprep.subr.mxu0 %v312
          %547 = vmatpush1.msra.mxu0 %v311
          %548 = vmatprep.subr.mxu0 %v316
          %549 = vmatpush1.msra.mxu0 %v315
          %550 = vmatprep.subr.mxu0 %v320
          %551 = vmatpush1.msra.mxu0 %v319
          %552 = vmatprep.subr.mxu0 %v324
          %553 = vmatpush1.msra.mxu0 %v323
          %554 = vmatprep.subr.mxu0 %v328
          %555 = vmatpush1.msra.mxu0 %v327
          %556 = vmatprep.subr.mxu0 %v332
          %557 = vmatpush1.msra.mxu0 %v331
          %558 = vmatprep.subr.mxu0 %v336
          %559 = vmatpush1.msra.mxu0 %v335
          %560 = vmatprep.subr.mxu0 %v340
          %561 = vmatpush1.msra.mxu0 %v339
          %562 = vmatprep.subr.mxu0 %v344
          %563 = vmatpush1.msra.mxu0 %v343
          %564 = vmatprep.subr.mxu0 %v348
          %565 = vmatpush1.msra.mxu0 %v347
          %566 = vmatprep.subr.mxu0 %v352
          %567 = vmatpush1.msra.mxu0 %v351
          %568 = vmatprep.subr.mxu0 %v356
          %569 = vmatpush1.msra.mxu0 %v355
          %570 = vmatprep.subr.mxu0 %v360
          %571 = vmatpush1.msra.mxu0 %v359
          %572 = vmatprep.subr.mxu0 %v364
          %573 = vmatpush1.msra.mxu0 %v363
          %574 = vmatprep.subr.mxu0 %v368
          %575 = vmatpush1.msra.mxu0 %v367
          %576 = vmatprep.subr.mxu0 %v372
          %577 = vmatpush1.msra.mxu0 %v371
          %578 = vmatprep.subr.mxu0 %v376
          %579 = vmatpush1.msra.mxu0 %v375
          %580 = vmatprep.subr.mxu0 %v380
          %581 = vmatpush1.msra.mxu0 %v379
          %582 = vmatprep.subr.mxu0 %v384
          %583 = vmatpush1.msra.mxu0 %v383
          %584 = vmatprep.subr.mxu0 %v388
          %585 = vmatpush1.msra.mxu0 %v387
          %586 = vmatprep.subr.mxu0 %v392
          %587 = vmatpush1.msra.mxu0 %v391
          %588 = vmatprep.subr.mxu0 %v396
          %589 = vmatpush1.msra.mxu0 %v395
          %590 = vmatprep.subr.mxu0 %v400
          %591 = vmatpush1.msra.mxu0 %v399
          %592 = vmatprep.subr.mxu0 %v404
          %593 = vmatpush1.msra.mxu0 %v403
          %594 = vmatprep.subr.mxu0 %v408
          %595 = vmatpush1.msra.mxu0 %v407
          %596 = vmatprep.mubr.f32.mxu0 %v270
          %597 = vmatmul.mubr.f32.gmra.mrb[0].mxu0 %v269
          %v598 = vpop.f32.mrb[0].mxu0
          %v599 = vadd.f32 %v422, %v598
          %v600 = vpop.f32.mrb[0].mxu0
          %v601 = vadd.f32 %v426, %v600
          %602 = vmatprep.mubr.f32.mxu0 %v272
          %603 = vmatmul.mubr.f32.gmra.mrb[0].mxu0 %v271
          %v604 = vpop.f32.mrb[0].mxu0
          %v605 = vadd.f32 %v422, %v604
          %v606 = vpop.f32.mrb[0].mxu0
          %v607 = vadd.f32 %v426, %v606
          %608 = vmatprep.mubr.f32.mxu0 %v274
          %609 = vmatmul.mubr.f32.gmra.mrb[0].mxu0 %v273
          %v610 = vpop.f32.mrb[0].mxu0
          %v611 = vadd.f32 %v422, %v610
          %v612 = vpop.f32.mrb[0].mxu0
          %v613 = vadd.f32 %v426, %v612
          %614 = vmatprep.mubr.f32.mxu0 %v276
          %615 = vmatmul.mubr.f32.gmra.mrb[0].mxu0 %v275
          %v616 = vpop.f32.mrb[0].mxu0
          %v617 = vadd.f32 %v422, %v616
          %v618 = vpop.f32.mrb[0].mxu0
          %v619 = vadd.f32 %v426, %v618
          %620 = vmatprep.mubr.f32.mxu0 %v278
          %621 = vmatmul.mubr.f32.gmra.mrb[0].mxu0 %v277
          %v622 = vpop.f32.mrb[0].mxu0
          %v623 = vadd.f32 %v422, %v622
          %v624 = vpop.f32.mrb[0].mxu0
          %v625 = vadd.f32 %v426, %v624
          %626 = vmatprep.mubr.f32.mxu0 %v280
          %627 = vmatmul.mubr.f32.gmra.mrb[0].mxu0 %v279
          %v628 = vpop.f32.mrb[0].mxu0
          %v629 = vadd.f32 %v422, %v628
          %v630 = vpop.f32.mrb[0].mxu0
          %v631 = vadd.f32 %v426, %v630
          %632 = vdwg.mxu0
          %633 = vst [vmem:[#allocation2] sm:$0xff] %v498
          %634 = vst [vmem:[#allocation2 + $0x8] sm:$0xff] %v500
          %635 = vst [vmem:[#allocation2 + $0x10] sm:$0xff] %v599
          %636 = vst [vmem:[#allocation2 + $0x18] sm:$0xff] %v601
          %637 = vst [vmem:[#allocation2 + $0x20] sm:$0xff] %v504
          %638 = vst [vmem:[#allocation2 + $0x28] sm:$0xff] %v506
          %639 = vst [vmem:[#allocation2 + $0x30] sm:$0xff] %v605
          %640 = vst [vmem:[#allocation2 + $0x38] sm:$0xff] %v607
          %641 = vst [vmem:[#allocation2 + $0x40] sm:$0xff] %v510
          %642 = vst [vmem:[#allocation2 + $0x48] sm:$0xff] %v512
          %643 = vst [vmem:[#allocation2 + $0x50] sm:$0xff] %v611
          %644 = vst [vmem:[#allocation2 + $0x58] sm:$0xff] %v613
          %645 = vst [vmem:[#allocation2 + $0x60] sm:$0xff] %v516
          %646 = vst [vmem:[#allocation2 + $0x68] sm:$0xff] %v518
          %647 = vst [vmem:[#allocation2 + $0x70] sm:$0xff] %v617
          %648 = vst [vmem:[#allocation2 + $0x78] sm:$0xff] %v619
          %649 = vst [vmem:[#allocation2 + $0x80] sm:$0xff] %v522
          %650 = vst [vmem:[#allocation2 + $0x88] sm:$0xff] %v524
          %651 = vst [vmem:[#allocation2 + $0x90] sm:$0xff] %v623
          %652 = vst [vmem:[#allocation2 + $0x98] sm:$0xff] %v625
          %653 = vst [vmem:[#allocation2 + $0xa0] sm:$0xff] %v528
          %654 = vst [vmem:[#allocation2 + $0xa8] sm:$0xff] %v530
          %655 = vst [vmem:[#allocation2 + $0xb0] sm:$0xff] %v629
          %656 = vst [vmem:[#allocation2 + $0xb8] sm:$0xff] %v631
          %v657 = vld [vmem:[#allocation2] sm:$0xff]
          %v658 = vld [vmem:[#allocation2 + $0x8] sm:$0xff]
          %v659 = vld [vmem:[#allocation2 + $0x10] sm:$0xff]
          %v660 = vld [vmem:[#allocation2 + $0x18] sm:$0xff]
          %v661 = vld [vmem:[#allocation7] sm:$0xff]
          %v662 = vld [vmem:[#allocation7 + $0x8] sm:$0xff]
          %v663 = vld [vmem:[#allocation7 + $0x10] sm:$0xff]
          %v664 = vld [vmem:[#allocation7 + $0x18] sm:$0xff]
          %v665 = vld [vmem:[#allocation7 + $0x20] sm:$0xff]
          %v666 = vld [vmem:[#allocation7 + $0x28] sm:$0xff]
          %v667 = vld [vmem:[#allocation7 + $0x30] sm:$0xff]
          %v668 = vld [vmem:[#allocation7 + $0x38] sm:$0xff]
          %v669 = vld [vmem:[#allocation7 + $0x40] sm:$0xff]
          %v670 = vld [vmem:[#allocation7 + $0x48] sm:$0xff]
          %v671 = vld [vmem:[#allocation7 + $0x50] sm:$0xff]
          %v672 = vld [vmem:[#allocation7 + $0x58] sm:$0xff]
          %v673 = vld [vmem:[#allocation7 + $0x60] sm:$0xff]
          %v674 = vld [vmem:[#allocation7 + $0x68] sm:$0xff]
          %v675 = vld [vmem:[#allocation7 + $0x70] sm:$0xff]
          %v676 = vld [vmem:[#allocation7 + $0x78] sm:$0xff]
          %v677 = vld [vmem:[#allocation7 + $0x80] sm:$0xff]
          %v678 = vld [vmem:[#allocation7 + $0x88] sm:$0xff]
          %v679 = vld [vmem:[#allocation7 + $0x90] sm:$0xff]
          %v680 = vld [vmem:[#allocation7 + $0x98] sm:$0xff]
          %v681 = vld [vmem:[#allocation7 + $0xa0] sm:$0xff]
          %v682 = vld [vmem:[#allocation7 + $0xa8] sm:$0xff]
          %v683 = vld [vmem:[#allocation7 + $0xb0] sm:$0xff]
          %v684 = vld [vmem:[#allocation7 + $0xb8] sm:$0xff]
          %v685 = vld [vmem:[#allocation7 + $0xc0] sm:$0xff]
          %v686 = vld [vmem:[#allocation7 + $0xc8] sm:$0xff]
          %v687 = vld [vmem:[#allocation7 + $0xd0] sm:$0xff]
          %v688 = vld [vmem:[#allocation7 + $0xd8] sm:$0xff]
          %v689 = vld [vmem:[#allocation7 + $0xe0] sm:$0xff]
          %v690 = vld [vmem:[#allocation7 + $0xe8] sm:$0xff]
          %v691 = vld [vmem:[#allocation7 + $0xf0] sm:$0xff]
          %v692 = vld [vmem:[#allocation7 + $0xf8] sm:$0xff]
          %v693 = vld [vmem:[#allocation7 + $0x100] sm:$0xff]
          %v694 = vld [vmem:[#allocation7 + $0x108] sm:$0xff]
          %v695 = vld [vmem:[#allocation7 + $0x110] sm:$0xff]
          %v696 = vld [vmem:[#allocation7 + $0x118] sm:$0xff]
          %v697 = vld [vmem:[#allocation7 + $0x120] sm:$0xff]
          %v698 = vld [vmem:[#allocation7 + $0x128] sm:$0xff]
          %v699 = vld [vmem:[#allocation7 + $0x130] sm:$0xff]
          %v700 = vld [vmem:[#allocation7 + $0x138] sm:$0xff]
          %v701 = vld [vmem:[#allocation7 + $0x140] sm:$0xff]
          %v702 = vld [vmem:[#allocation7 + $0x148] sm:$0xff]
          %v703 = vld [vmem:[#allocation7 + $0x150] sm:$0xff]
          %v704 = vld [vmem:[#allocation7 + $0x158] sm:$0xff]
          %v705 = vld [vmem:[#allocation7 + $0x160] sm:$0xff]
          %v706 = vld [vmem:[#allocation7 + $0x168] sm:$0xff]
          %v707 = vld [vmem:[#allocation7 + $0x170] sm:$0xff]
          %v708 = vld [vmem:[#allocation7 + $0x178] sm:$0xff]
          %v709 = vld [vmem:[#allocation7 + $0x180] sm:$0xff]
          %v710 = vld [vmem:[#allocation7 + $0x188] sm:$0xff]
          %v711 = vld [vmem:[#allocation7 + $0x190] sm:$0xff]
          %v712 = vld [vmem:[#allocation7 + $0x198] sm:$0xff]
          %v713 = vld [vmem:[#allocation7 + $0x1a0] sm:$0xff]
          %v714 = vld [vmem:[#allocation7 + $0x1a8] sm:$0xff]
          %v715 = vld [vmem:[#allocation7 + $0x1b0] sm:$0xff]
          %v716 = vld [vmem:[#allocation7 + $0x1b8] sm:$0xff]
          %v717 = vld [vmem:[#allocation7 + $0x1c0] sm:$0xff]
          %v718 = vld [vmem:[#allocation7 + $0x1c8] sm:$0xff]
          %v719 = vld [vmem:[#allocation7 + $0x1d0] sm:$0xff]
          %v720 = vld [vmem:[#allocation7 + $0x1d8] sm:$0xff]
          %v721 = vld [vmem:[#allocation7 + $0x1e0] sm:$0xff]
          %v722 = vld [vmem:[#allocation7 + $0x1e8] sm:$0xff]
          %v723 = vld [vmem:[#allocation7 + $0x1f0] sm:$0xff]
          %v724 = vld [vmem:[#allocation7 + $0x1f8] sm:$0xff]
          %725 = vmatprep.subr.mxu0 %v662
          %726 = vmatpush1.msra.mxu0 %v661
          %727 = vmatprep.subr.mxu0 %v666
          %728 = vmatpush1.msra.mxu0 %v665
          %729 = vmatprep.subr.mxu0 %v670
          %730 = vmatpush1.msra.mxu0 %v669
          %731 = vmatprep.subr.mxu0 %v674
          %732 = vmatpush1.msra.mxu0 %v673
          %733 = vmatprep.subr.mxu0 %v678
          %734 = vmatpush1.msra.mxu0 %v677
          %735 = vmatprep.subr.mxu0 %v682
          %736 = vmatpush1.msra.mxu0 %v681
          %737 = vmatprep.subr.mxu0 %v686
          %738 = vmatpush1.msra.mxu0 %v685
          %739 = vmatprep.subr.mxu0 %v690
          %740 = vmatpush1.msra.mxu0 %v689
          %741 = vmatprep.subr.mxu0 %v694
          %742 = vmatpush1.msra.mxu0 %v693
          %743 = vmatprep.subr.mxu0 %v698
          %744 = vmatpush1.msra.mxu0 %v697
          %745 = vmatprep.subr.mxu0 %v702
          %746 = vmatpush1.msra.mxu0 %v701
          %747 = vmatprep.subr.mxu0 %v706
          %748 = vmatpush1.msra.mxu0 %v705
          %749 = vmatprep.subr.mxu0 %v710
          %750 = vmatpush1.msra.mxu0 %v709
          %751 = vmatprep.subr.mxu0 %v714
          %752 = vmatpush1.msra.mxu0 %v713
          %753 = vmatprep.subr.mxu0 %v718
          %754 = vmatpush1.msra.mxu0 %v717
          %755 = vmatprep.subr.mxu0 %v722
          %756 = vmatpush1.msra.mxu0 %v721
          %757 = vmatprep.subr.mxu0 0.0
          %758 = vmatpush1.msra.mxu0 0.0
          %759 = vmatprep.subr.mxu0 0.0
          %760 = vmatpush1.msra.mxu0 0.0
          %761 = vmatprep.subr.mxu0 0.0
          %762 = vmatpush1.msra.mxu0 0.0
          %763 = vmatprep.subr.mxu0 0.0
          %764 = vmatpush1.msra.mxu0 0.0
          %765 = vmatprep.subr.mxu0 0.0
          %766 = vmatpush1.msra.mxu0 0.0
          %767 = vmatprep.subr.mxu0 0.0
          %768 = vmatpush1.msra.mxu0 0.0
          %769 = vmatprep.subr.mxu0 0.0
          %770 = vmatpush1.msra.mxu0 0.0
          %771 = vmatprep.subr.mxu0 0.0
          %772 = vmatpush1.msra.mxu0 0.0
          %773 = vmatprep.subr.mxu0 0.0
          %774 = vmatpush1.msra.mxu0 0.0
          %775 = vmatprep.subr.mxu0 0.0
          %776 = vmatpush1.msra.mxu0 0.0
          %777 = vmatprep.subr.mxu0 0.0
          %778 = vmatpush1.msra.mxu0 0.0
          %779 = vmatprep.subr.mxu0 0.0
          %780 = vmatpush1.msra.mxu0 0.0
          %781 = vmatprep.subr.mxu0 0.0
          %782 = vmatpush1.msra.mxu0 0.0
          %783 = vmatprep.subr.mxu0 0.0
          %784 = vmatpush1.msra.mxu0 0.0
          %785 = vmatprep.subr.mxu0 0.0
          %786 = vmatpush1.msra.mxu0 0.0
          %787 = vmatprep.subr.mxu0 0.0
          %788 = vmatpush1.msra.mxu0 0.0
          %789 = vmatprep.mubr.f32.mxu0 0.0
          %790 = vmatmul.mubr.f32.gmra.mrb[0].mxu0 0.0
          %v791 = vpop.f32.mrb[0].mxu0
          %v792 = vadd.f32 0.0, %v791
          %v793 = vpop.f32.mrb[0].mxu0
          %v794 = vadd.f32 0.0, %v793
          %795 = vdwg.mxu0
          %796 = vmatprep.subr.mxu0 %v664
          %797 = vmatpush1.msra.mxu0 %v663
          %798 = vmatprep.subr.mxu0 %v668
          %799 = vmatpush1.msra.mxu0 %v667
          %800 = vmatprep.subr.mxu0 %v672
          %801 = vmatpush1.msra.mxu0 %v671
          %802 = vmatprep.subr.mxu0 %v676
          %803 = vmatpush1.msra.mxu0 %v675
          %804 = vmatprep.subr.mxu0 %v680
          %805 = vmatpush1.msra.mxu0 %v679
          %806 = vmatprep.subr.mxu0 %v684
          %807 = vmatpush1.msra.mxu0 %v683
          %808 = vmatprep.subr.mxu0 %v688
          %809 = vmatpush1.msra.mxu0 %v687
          %810 = vmatprep.subr.mxu0 %v692
          %811 = vmatpush1.msra.mxu0 %v691
          %812 = vmatprep.subr.mxu0 %v696
          %813 = vmatpush1.msra.mxu0 %v695
          %814 = vmatprep.subr.mxu0 %v700
          %815 = vmatpush1.msra.mxu0 %v699
          %816 = vmatprep.subr.mxu0 %v704
          %817 = vmatpush1.msra.mxu0 %v703
          %818 = vmatprep.subr.mxu0 %v708
          %819 = vmatpush1.msra.mxu0 %v707
          %820 = vmatprep.subr.mxu0 %v712
          %821 = vmatpush1.msra.mxu0 %v711
          %822 = vmatprep.subr.mxu0 %v716
          %823 = vmatpush1.msra.mxu0 %v715
          %824 = vmatprep.subr.mxu0 %v720
          %825 = vmatpush1.msra.mxu0 %v719
          %826 = vmatprep.subr.mxu0 %v724
          %827 = vmatpush1.msra.mxu0 %v723
          %828 = vmatprep.subr.mxu0 0.0
          %829 = vmatpush1.msra.mxu0 0.0
          %830 = vmatprep.subr.mxu0 0.0
          %831 = vmatpush1.msra.mxu0 0.0
          %832 = vmatprep.subr.mxu0 0.0
          %833 = vmatpush1.msra.mxu0 0.0
          %834 = vmatprep.subr.mxu0 0.0
          %835 = vmatpush1.msra.mxu0 0.0
          %836 = vmatprep.subr.mxu0 0.0
          %837 = vmatpush1.msra.mxu0 0.0
          %838 = vmatprep.subr.mxu0 0.0
          %839 = vmatpush1.msra.mxu0 0.0
          %840 = vmatprep.subr.mxu0 0.0
          %841 = vmatpush1.msra.mxu0 0.0
          %842 = vmatprep.subr.mxu0 0.0
          %843 = vmatpush1.msra.mxu0 0.0
          %844 = vmatprep.subr.mxu0 0.0
          %845 = vmatpush1.msra.mxu0 0.0
          %846 = vmatprep.subr.mxu0 0.0
          %847 = vmatpush1.msra.mxu0 0.0
          %848 = vmatprep.subr.mxu0 0.0
          %849 = vmatpush1.msra.mxu0 0.0
          %850 = vmatprep.subr.mxu0 0.0
          %851 = vmatpush1.msra.mxu0 0.0
          %852 = vmatprep.subr.mxu0 0.0
          %853 = vmatpush1.msra.mxu0 0.0
          %854 = vmatprep.subr.mxu0 0.0
          %855 = vmatpush1.msra.mxu0 0.0
          %856 = vmatprep.subr.mxu0 0.0
          %857 = vmatpush1.msra.mxu0 0.0
          %858 = vmatprep.subr.mxu0 0.0
          %859 = vmatpush1.msra.mxu0 0.0
          %860 = vmatprep.mubr.f32.mxu0 0.0
          %861 = vmatmul.mubr.f32.gmra.mrb[0].mxu0 0.0
          %v862 = vpop.f32.mrb[0].mxu0
          %v863 = vadd.f32 0.0, %v862
          %v864 = vpop.f32.mrb[0].mxu0
          %v865 = vadd.f32 0.0, %v864
          %866 = vdwg.mxu0
          %v867 = vadd.f32 %v657, %v792
          %v868 = vadd.f32 %v658, %v794
          %v869 = vadd.f32 %v659, %v863
          %v870 = vadd.f32 %v660, %v865
          %v871 = vxor.u32 %v867, 2147483648
          %v872 = vmul.f32 %v871, 1.442695
          %v873 = vpow.pop %v872
          %v874 = vadd.f32 %v873, 1.0
          %v875 = vrcp.pop %v874
          %v876 = vmul.f32 1.0, %v875
          %v877 = vxor.u32 %v868, 2147483648
          %v878 = vmul.f32 %v877, 1.442695
          %v879 = vpow.pop %v878
          %v880 = vadd.f32 %v879, 1.0
          %v881 = vrcp.pop %v880
          %v882 = vmul.f32 1.0, %v881
          %v883 = vtanh.pop %v869
          %v884 = vxor.u32 %v870, 2147483648
          %v885 = vmul.f32 %v884, 1.442695
          %v886 = vpow.pop %v885
          %v887 = vadd.f32 %v886, 1.0
          %v888 = vrcp.pop %v887
          %v889 = vmul.f32 1.0, %v888
          %v890 = vmul.f32 %v882, 0.0
          %v891 = vmul.f32 %v876, %v883
          %v892 = vadd.f32 %v890, %v891
          %v893 = vtanh.pop %v892
          %v894 = vmul.f32 %v889, %v893
          %v895 = vld [vmem:[#allocation2 + $0x20] sm:$0xff]
          %v896 = vld [vmem:[#allocation2 + $0x28] sm:$0xff]
          %v897 = vld [vmem:[#allocation2 + $0x30] sm:$0xff]
          %v898 = vld [vmem:[#allocation2 + $0x38] sm:$0xff]
          %899 = vmatprep.subr.mxu0 %v662
          %900 = vmatpush1.msra.mxu0 %v661
          %901 = vmatprep.subr.mxu0 %v666
          %902 = vmatpush1.msra.mxu0 %v665
          %903 = vmatprep.subr.mxu0 %v670
          %904 = vmatpush1.msra.mxu0 %v669
          %905 = vmatprep.subr.mxu0 %v674
          %906 = vmatpush1.msra.mxu0 %v673
          %907 = vmatprep.subr.mxu0 %v678
          %908 = vmatpush1.msra.mxu0 %v677
          %909 = vmatprep.subr.mxu0 %v682
          %910 = vmatpush1.msra.mxu0 %v681
          %911 = vmatprep.subr.mxu0 %v686
          %912 = vmatpush1.msra.mxu0 %v685
          %913 = vmatprep.subr.mxu0 %v690
          %914 = vmatpush1.msra.mxu0 %v689
          %915 = vmatprep.subr.mxu0 %v694
          %916 = vmatpush1.msra.mxu0 %v693
          %917 = vmatprep.subr.mxu0 %v698
          %918 = vmatpush1.msra.mxu0 %v697
          %919 = vmatprep.subr.mxu0 %v702
          %920 = vmatpush1.msra.mxu0 %v701
          %921 = vmatprep.subr.mxu0 %v706
          %922 = vmatpush1.msra.mxu0 %v705
          %923 = vmatprep.subr.mxu0 %v710
          %924 = vmatpush1.msra.mxu0 %v709
          %925 = vmatprep.subr.mxu0 %v714
          %926 = vmatpush1.msra.mxu0 %v713
          %927 = vmatprep.subr.mxu0 %v718
          %928 = vmatpush1.msra.mxu0 %v717
          %929 = vmatprep.subr.mxu0 %v722
          %930 = vmatpush1.msra.mxu0 %v721
          %931 = vmatprep.subr.mxu0 0.0
          %932 = vmatpush1.msra.mxu0 0.0
          %933 = vmatprep.subr.mxu0 0.0
          %934 = vmatpush1.msra.mxu0 0.0
          %935 = vmatprep.subr.mxu0 0.0
          %936 = vmatpush1.msra.mxu0 0.0
          %937 = vmatprep.subr.mxu0 0.0
          %938 = vmatpush1.msra.mxu0 0.0
          %939 = vmatprep.subr.mxu0 0.0
          %940 = vmatpush1.msra.mxu0 0.0
          %941 = vmatprep.subr.mxu0 0.0
          %942 = vmatpush1.msra.mxu0 0.0
          %943 = vmatprep.subr.mxu0 0.0
          %944 = vmatpush1.msra.mxu0 0.0
          %945 = vmatprep.subr.mxu0 0.0
          %946 = vmatpush1.msra.mxu0 0.0
          %947 = vmatprep.subr.mxu0 0.0
          %948 = vmatpush1.msra.mxu0 0.0
          %949 = vmatprep.subr.mxu0 0.0
          %950 = vmatpush1.msra.mxu0 0.0
          %951 = vmatprep.subr.mxu0 0.0
          %952 = vmatpush1.msra.mxu0 0.0
          %953 = vmatprep.subr.mxu0 0.0
          %954 = vmatpush1.msra.mxu0 0.0
          %955 = vmatprep.subr.mxu0 0.0
          %956 = vmatpush1.msra.mxu0 0.0
          %957 = vmatprep.subr.mxu0 0.0
          %958 = vmatpush1.msra.mxu0 0.0
          %959 = vmatprep.subr.mxu0 0.0
          %960 = vmatpush1.msra.mxu0 0.0
          %961 = vmatprep.subr.mxu0 0.0
          %962 = vmatpush1.msra.mxu0 0.0
          %963 = vmatprep.mubr.f32.mxu0 0.0
          %964 = vmatmul.mubr.f32.gmra.mrb[0].mxu0 %v894
          %v965 = vpop.f32.mrb[0].mxu0
          %v966 = vadd.f32 0.0, %v965
          %v967 = vpop.f32.mrb[0].mxu0
          %v968 = vadd.f32 0.0, %v967
          %969 = vdwg.mxu0
          %970 = vmatprep.subr.mxu0 %v664
          %971 = vmatpush1.msra.mxu0 %v663
          %972 = vmatprep.subr.mxu0 %v668
          %973 = vmatpush1.msra.mxu0 %v667
          %974 = vmatprep.subr.mxu0 %v672
          %975 = vmatpush1.msra.mxu0 %v671
          %976 = vmatprep.subr.mxu0 %v676
          %977 = vmatpush1.msra.mxu0 %v675
          %978 = vmatprep.subr.mxu0 %v680
          %979 = vmatpush1.msra.mxu0 %v679
          %980 = vmatprep.subr.mxu0 %v684
          %981 = vmatpush1.msra.mxu0 %v683
          %982 = vmatprep.subr.mxu0 %v688
          %983 = vmatpush1.msra.mxu0 %v687
          %984 = vmatprep.subr.mxu0 %v692
          %985 = vmatpush1.msra.mxu0 %v691
          %986 = vmatprep.subr.mxu0 %v696
          %987 = vmatpush1.msra.mxu0 %v695
          %988 = vmatprep.subr.mxu0 %v700
          %989 = vmatpush1.msra.mxu0 %v699
          %990 = vmatprep.subr.mxu0 %v704
          %991 = vmatpush1.msra.mxu0 %v703
          %992 = vmatprep.subr.mxu0 %v708
          %993 = vmatpush1.msra.mxu0 %v707
          %994 = vmatprep.subr.mxu0 %v712
          %995 = vmatpush1.msra.mxu0 %v711
          %996 = vmatprep.subr.mxu0 %v716
          %997 = vmatpush1.msra.mxu0 %v715
          %998 = vmatprep.subr.mxu0 %v720
          %999 = vmatpush1.msra.mxu0 %v719
          %1000 = vmatprep.subr.mxu0 %v724
          %1001 = vmatpush1.msra.mxu0 %v723
          %1002 = vmatprep.subr.mxu0 0.0
          %1003 = vmatpush1.msra.mxu0 0.0
          %1004 = vmatprep.subr.mxu0 0.0
          %1005 = vmatpush1.msra.mxu0 0.0
          %1006 = vmatprep.subr.mxu0 0.0
          %1007 = vmatpush1.msra.mxu0 0.0
          %1008 = vmatprep.subr.mxu0 0.0
          %1009 = vmatpush1.msra.mxu0 0.0
          %1010 = vmatprep.subr.mxu0 0.0
          %1011 = vmatpush1.msra.mxu0 0.0
          %1012 = vmatprep.subr.mxu0 0.0
          %1013 = vmatpush1.msra.mxu0 0.0
          %1014 = vmatprep.subr.mxu0 0.0
          %1015 = vmatpush1.msra.mxu0 0.0
          %1016 = vmatprep.subr.mxu0 0.0
          %1017 = vmatpush1.msra.mxu0 0.0
          %1018 = vmatprep.subr.mxu0 0.0
          %1019 = vmatpush1.msra.mxu0 0.0
          %1020 = vmatprep.subr.mxu0 0.0
          %1021 = vmatpush1.msra.mxu0 0.0
          %1022 = vmatprep.subr.mxu0 0.0
          %1023 = vmatpush1.msra.mxu0 0.0
          %1024 = vmatprep.subr.mxu0 0.0
          %1025 = vmatpush1.msra.mxu0 0.0
          %1026 = vmatprep.subr.mxu0 0.0
          %1027 = vmatpush1.msra.mxu0 0.0
          %1028 = vmatprep.subr.mxu0 0.0
          %1029 = vmatpush1.msra.mxu0 0.0
          %1030 = vmatprep.subr.mxu0 0.0
          %1031 = vmatpush1.msra.mxu0 0.0
          %1032 = vmatprep.subr.mxu0 0.0
          %1033 = vmatpush1.msra.mxu0 0.0
          %1034 = vmatprep.mubr.f32.mxu0 0.0
          %1035 = vmatmul.mubr.f32.gmra.mrb[0].mxu0 %v894
          %v1036 = vpop.f32.mrb[0].mxu0
          %v1037 = vadd.f32 0.0, %v1036
          %v1038 = vpop.f32.mrb[0].mxu0
          %v1039 = vadd.f32 0.0, %v1038
          %1040 = vdwg.mxu0
          %v1041 = vadd.f32 %v895, %v966
          %v1042 = vadd.f32 %v896, %v968
          %v1043 = vadd.f32 %v897, %v1037
          %v1044 = vadd.f32 %v898, %v1039
          %v1045 = vxor.u32 %v1041, 2147483648
          %v1046 = vmul.f32 %v1045, 1.442695
          %v1047 = vpow.pop %v1046
          %v1048 = vadd.f32 %v1047, 1.0
          %v1049 = vrcp.pop %v1048
          %v1050 = vmul.f32 1.0, %v1049
          %v1051 = vxor.u32 %v1042, 2147483648
          %v1052 = vmul.f32 %v1051, 1.442695
          %v1053 = vpow.pop %v1052
          %v1054 = vadd.f32 %v1053, 1.0
          %v1055 = vrcp.pop %v1054
          %v1056 = vmul.f32 1.0, %v1055
          %v1057 = vtanh.pop %v1043
          %v1058 = vxor.u32 %v1044, 2147483648
          %v1059 = vmul.f32 %v1058, 1.442695
          %v1060 = vpow.pop %v1059
          %v1061 = vadd.f32 %v1060, 1.0
          %v1062 = vrcp.pop %v1061
          %v1063 = vmul.f32 1.0, %v1062
          %v1064 = vmul.f32 %v1056, %v892
          %v1065 = vmul.f32 %v1050, %v1057
          %v1066 = vadd.f32 %v1064, %v1065
          %v1067 = vtanh.pop %v1066
          %v1068 = vmul.f32 %v1063, %v1067
          %v1069 = vld [vmem:[#allocation2 + $0x40] sm:$0xff]
          %v1070 = vld [vmem:[#allocation2 + $0x48] sm:$0xff]
          %v1071 = vld [vmem:[#allocation2 + $0x50] sm:$0xff]
          %v1072 = vld [vmem:[#allocation2 + $0x58] sm:$0xff]
          %1073 = vmatprep.subr.mxu0 %v662
          %1074 = vmatpush1.msra.mxu0 %v661
          %1075 = vmatprep.subr.mxu0 %v666
          %1076 = vmatpush1.msra.mxu0 %v665
          %1077 = vmatprep.subr.mxu0 %v670
          %1078 = vmatpush1.msra.mxu0 %v669
          %1079 = vmatprep.subr.mxu0 %v674
          %1080 = vmatpush1.msra.mxu0 %v673
          %1081 = vmatprep.subr.mxu0 %v678
          %1082 = vmatpush1.msra.mxu0 %v677
          %1083 = vmatprep.subr.mxu0 %v682
          %1084 = vmatpush1.msra.mxu0 %v681
          %1085 = vmatprep.subr.mxu0 %v686
          %1086 = vmatpush1.msra.mxu0 %v685
          %1087 = vmatprep.subr.mxu0 %v690
          %1088 = vmatpush1.msra.mxu0 %v689
          %1089 = vmatprep.subr.mxu0 %v694
          %1090 = vmatpush1.msra.mxu0 %v693
          %1091 = vmatprep.subr.mxu0 %v698
          %1092 = vmatpush1.msra.mxu0 %v697
          %1093 = vmatprep.subr.mxu0 %v702
          %1094 = vmatpush1.msra.mxu0 %v701
          %1095 = vmatprep.subr.mxu0 %v706
          %1096 = vmatpush1.msra.mxu0 %v705
          %1097 = vmatprep.subr.mxu0 %v710
          %1098 = vmatpush1.msra.mxu0 %v709
          %1099 = vmatprep.subr.mxu0 %v714
          %1100 = vmatpush1.msra.mxu0 %v713
          %1101 = vmatprep.subr.mxu0 %v718
          %1102 = vmatpush1.msra.mxu0 %v717
          %1103 = vmatprep.subr.mxu0 %v722
          %1104 = vmatpush1.msra.mxu0 %v721
          %1105 = vmatprep.subr.mxu0 0.0
          %1106 = vmatpush1.msra.mxu0 0.0
          %1107 = vmatprep.subr.mxu0 0.0
          %1108 = vmatpush1.msra.mxu0 0.0
          %1109 = vmatprep.subr.mxu0 0.0
          %1110 = vmatpush1.msra.mxu0 0.0
          %1111 = vmatprep.subr.mxu0 0.0
          %1112 = vmatpush1.msra.mxu0 0.0
          %1113 = vmatprep.subr.mxu0 0.0
          %1114 = vmatpush1.msra.mxu0 0.0
          %1115 = vmatprep.subr.mxu0 0.0
          %1116 = vmatpush1.msra.mxu0 0.0
          %1117 = vmatprep.subr.mxu0 0.0
          %1118 = vmatpush1.msra.mxu0 0.0
          %1119 = vmatprep.subr.mxu0 0.0
          %1120 = vmatpush1.msra.mxu0 0.0
          %1121 = vmatprep.subr.mxu0 0.0
          %1122 = vmatpush1.msra.mxu0 0.0
          %1123 = vmatprep.subr.mxu0 0.0
          %1124 = vmatpush1.msra.mxu0 0.0
          %1125 = vmatprep.subr.mxu0 0.0
          %1126 = vmatpush1.msra.mxu0 0.0
          %1127 = vmatprep.subr.mxu0 0.0
          %1128 = vmatpush1.msra.mxu0 0.0
          %1129 = vmatprep.subr.mxu0 0.0
          %1130 = vmatpush1.msra.mxu0 0.0
          %1131 = vmatprep.subr.mxu0 0.0
          %1132 = vmatpush1.msra.mxu0 0.0
          %1133 = vmatprep.subr.mxu0 0.0
          %1134 = vmatpush1.msra.mxu0 0.0
          %1135 = vmatprep.subr.mxu0 0.0
          %1136 = vmatpush1.msra.mxu0 0.0
          %1137 = vmatprep.mubr.f32.mxu0 0.0
          %1138 = vmatmul.mubr.f32.gmra.mrb[0].mxu0 %v1068
          %v1139 = vpop.f32.mrb[0].mxu0
          %v1140 = vadd.f32 0.0, %v1139
          %v1141 = vpop.f32.mrb[0].mxu0
          %v1142 = vadd.f32 0.0, %v1141
          %1143 = vdwg.mxu0
          %1144 = vmatprep.subr.mxu0 %v664
          %1145 = vmatpush1.msra.mxu0 %v663
          %1146 = vmatprep.subr.mxu0 %v668
          %1147 = vmatpush1.msra.mxu0 %v667
          %1148 = vmatprep.subr.mxu0 %v672
          %1149 = vmatpush1.msra.mxu0 %v671
          %1150 = vmatprep.subr.mxu0 %v676
          %1151 = vmatpush1.msra.mxu0 %v675
          %1152 = vmatprep.subr.mxu0 %v680
          %1153 = vmatpush1.msra.mxu0 %v679
          %1154 = vmatprep.subr.mxu0 %v684
          %1155 = vmatpush1.msra.mxu0 %v683
          %1156 = vmatprep.subr.mxu0 %v688
          %1157 = vmatpush1.msra.mxu0 %v687
          %1158 = vmatprep.subr.mxu0 %v692
          %1159 = vmatpush1.msra.mxu0 %v691
          %1160 = vmatprep.subr.mxu0 %v696
          %1161 = vmatpush1.msra.mxu0 %v695
          %1162 = vmatprep.subr.mxu0 %v700
          %1163 = vmatpush1.msra.mxu0 %v699
          %1164 = vmatprep.subr.mxu0 %v704
          %1165 = vmatpush1.msra.mxu0 %v703
          %1166 = vmatprep.subr.mxu0 %v708
          %1167 = vmatpush1.msra.mxu0 %v707
          %1168 = vmatprep.subr.mxu0 %v712
          %1169 = vmatpush1.msra.mxu0 %v711
          %1170 = vmatprep.subr.mxu0 %v716
          %1171 = vmatpush1.msra.mxu0 %v715
          %1172 = vmatprep.subr.mxu0 %v720
          %1173 = vmatpush1.msra.mxu0 %v719
          %1174 = vmatprep.subr.mxu0 %v724
          %1175 = vmatpush1.msra.mxu0 %v723
          %1176 = vmatprep.subr.mxu0 0.0
          %1177 = vmatpush1.msra.mxu0 0.0
          %1178 = vmatprep.subr.mxu0 0.0
          %1179 = vmatpush1.msra.mxu0 0.0
          %1180 = vmatprep.subr.mxu0 0.0
          %1181 = vmatpush1.msra.mxu0 0.0
          %1182 = vmatprep.subr.mxu0 0.0
          %1183 = vmatpush1.msra.mxu0 0.0
          %1184 = vmatprep.subr.mxu0 0.0
          %1185 = vmatpush1.msra.mxu0 0.0
          %1186 = vmatprep.subr.mxu0 0.0
          %1187 = vmatpush1.msra.mxu0 0.0
          %1188 = vmatprep.subr.mxu0 0.0
          %1189 = vmatpush1.msra.mxu0 0.0
          %1190 = vmatprep.subr.mxu0 0.0
          %1191 = vmatpush1.msra.mxu0 0.0
          %1192 = vmatprep.subr.mxu0 0.0
          %1193 = vmatpush1.msra.mxu0 0.0
          %1194 = vmatprep.subr.mxu0 0.0
          %1195 = vmatpush1.msra.mxu0 0.0
          %1196 = vmatprep.subr.mxu0 0.0
          %1197 = vmatpush1.msra.mxu0 0.0
          %1198 = vmatprep.subr.mxu0 0.0
          %1199 = vmatpush1.msra.mxu0 0.0
          %1200 = vmatprep.subr.mxu0 0.0
          %1201 = vmatpush1.msra.mxu0 0.0
          %1202 = vmatprep.subr.mxu0 0.0
          %1203 = vmatpush1.msra.mxu0 0.0
          %1204 = vmatprep.subr.mxu0 0.0
          %1205 = vmatpush1.msra.mxu0 0.0
          %1206 = vmatprep.subr.mxu0 0.0
          %1207 = vmatpush1.msra.mxu0 0.0
          %1208 = vmatprep.mubr.f32.mxu0 0.0
          %1209 = vmatmul.mubr.f32.gmra.mrb[0].mxu0 %v1068
          %v1210 = vpop.f32.mrb[0].mxu0
          %v1211 = vadd.f32 0.0, %v1210
          %v1212 = vpop.f32.mrb[0].mxu0
          %v1213 = vadd.f32 0.0, %v1212
          %1214 = vdwg.mxu0
          %v1215 = vadd.f32 %v1069, %v1140
          %v1216 = vadd.f32 %v1070, %v1142
          %v1217 = vadd.f32 %v1071, %v1211
          %v1218 = vadd.f32 %v1072, %v1213
          %v1219 = vxor.u32 %v1215, 2147483648
          %v1220 = vmul.f32 %v1219, 1.442695
          %v1221 = vpow.pop %v1220
          %v1222 = vadd.f32 %v1221, 1.0
          %v1223 = vrcp.pop %v1222
          %v1224 = vmul.f32 1.0, %v1223
          %v1225 = vxor.u32 %v1216, 2147483648
          %v1226 = vmul.f32 %v1225, 1.442695
          %v1227 = vpow.pop %v1226
          %v1228 = vadd.f32 %v1227, 1.0
          %v1229 = vrcp.pop %v1228
          %v1230 = vmul.f32 1.0, %v1229
          %v1231 = vtanh.pop %v1217
          %v1232 = vxor.u32 %v1218, 2147483648
          %v1233 = vmul.f32 %v1232, 1.442695
          %v1234 = vpow.pop %v1233
          %v1235 = vadd.f32 %v1234, 1.0
          %v1236 = vrcp.pop %v1235
          %v1237 = vmul.f32 1.0, %v1236
          %v1238 = vmul.f32 %v1230, %v1066
          %v1239 = vmul.f32 %v1224, %v1231
          %v1240 = vadd.f32 %v1238, %v1239
          %v1241 = vtanh.pop %v1240
          %v1242 = vmul.f32 %v1237, %v1241
          %v1243 = vld [vmem:[#allocation2 + $0x60] sm:$0xff]
          %v1244 = vld [vmem:[#allocation2 + $0x68] sm:$0xff]
          %v1245 = vld [vmem:[#allocation2 + $0x70] sm:$0xff]
          %v1246 = vld [vmem:[#allocation2 + $0x78] sm:$0xff]
          %1247 = vmatprep.subr.mxu0 %v662
          %1248 = vmatpush1.msra.mxu0 %v661
          %1249 = vmatprep.subr.mxu0 %v666
          %1250 = vmatpush1.msra.mxu0 %v665
          %1251 = vmatprep.subr.mxu0 %v670
          %1252 = vmatpush1.msra.mxu0 %v669
          %1253 = vmatprep.subr.mxu0 %v674
          %1254 = vmatpush1.msra.mxu0 %v673
          %1255 = vmatprep.subr.mxu0 %v678
          %1256 = vmatpush1.msra.mxu0 %v677
          %1257 = vmatprep.subr.mxu0 %v682
          %1258 = vmatpush1.msra.mxu0 %v681
          %1259 = vmatprep.subr.mxu0 %v686
          %1260 = vmatpush1.msra.mxu0 %v685
          %1261 = vmatprep.subr.mxu0 %v690
          %1262 = vmatpush1.msra.mxu0 %v689
          %1263 = vmatprep.subr.mxu0 %v694
          %1264 = vmatpush1.msra.mxu0 %v693
          %1265 = vmatprep.subr.mxu0 %v698
          %1266 = vmatpush1.msra.mxu0 %v697
          %1267 = vmatprep.subr.mxu0 %v702
          %1268 = vmatpush1.msra.mxu0 %v701
          %1269 = vmatprep.subr.mxu0 %v706
          %1270 = vmatpush1.msra.mxu0 %v705
          %1271 = vmatprep.subr.mxu0 %v710
          %1272 = vmatpush1.msra.mxu0 %v709
          %1273 = vmatprep.subr.mxu0 %v714
          %1274 = vmatpush1.msra.mxu0 %v713
          %1275 = vmatprep.subr.mxu0 %v718
          %1276 = vmatpush1.msra.mxu0 %v717
          %1277 = vmatprep.subr.mxu0 %v722
          %1278 = vmatpush1.msra.mxu0 %v721
          %1279 = vmatprep.subr.mxu0 0.0
          %1280 = vmatpush1.msra.mxu0 0.0
          %1281 = vmatprep.subr.mxu0 0.0
          %1282 = vmatpush1.msra.mxu0 0.0
          %1283 = vmatprep.subr.mxu0 0.0
          %1284 = vmatpush1.msra.mxu0 0.0
          %1285 = vmatprep.subr.mxu0 0.0
          %1286 = vmatpush1.msra.mxu0 0.0
          %1287 = vmatprep.subr.mxu0 0.0
          %1288 = vmatpush1.msra.mxu0 0.0
          %1289 = vmatprep.subr.mxu0 0.0
          %1290 = vmatpush1.msra.mxu0 0.0
          %1291 = vmatprep.subr.mxu0 0.0
          %1292 = vmatpush1.msra.mxu0 0.0
          %1293 = vmatprep.subr.mxu0 0.0
          %1294 = vmatpush1.msra.mxu0 0.0
          %1295 = vmatprep.subr.mxu0 0.0
          %1296 = vmatpush1.msra.mxu0 0.0
          %1297 = vmatprep.subr.mxu0 0.0
          %1298 = vmatpush1.msra.mxu0 0.0
          %1299 = vmatprep.subr.mxu0 0.0
          %1300 = vmatpush1.msra.mxu0 0.0
          %1301 = vmatprep.subr.mxu0 0.0
          %1302 = vmatpush1.msra.mxu0 0.0
          %1303 = vmatprep.subr.mxu0 0.0
          %1304 = vmatpush1.msra.mxu0 0.0
          %1305 = vmatprep.subr.mxu0 0.0
          %1306 = vmatpush1.msra.mxu0 0.0
          %1307 = vmatprep.subr.mxu0 0.0
          %1308 = vmatpush1.msra.mxu0 0.0
          %1309 = vmatprep.subr.mxu0 0.0
          %1310 = vmatpush1.msra.mxu0 0.0
          %1311 = vmatprep.mubr.f32.mxu0 0.0
          %1312 = vmatmul.mubr.f32.gmra.mrb[0].mxu0 %v1242
          %v1313 = vpop.f32.mrb[0].mxu0
          %v1314 = vadd.f32 0.0, %v1313
          %v1315 = vpop.f32.mrb[0].mxu0
          %v1316 = vadd.f32 0.0, %v1315
          %1317 = vdwg.mxu0
          %1318 = vmatprep.subr.mxu0 %v664
          %1319 = vmatpush1.msra.mxu0 %v663
          %1320 = vmatprep.subr.mxu0 %v668
          %1321 = vmatpush1.msra.mxu0 %v667
          %1322 = vmatprep.subr.mxu0 %v672
          %1323 = vmatpush1.msra.mxu0 %v671
          %1324 = vmatprep.subr.mxu0 %v676
          %1325 = vmatpush1.msra.mxu0 %v675
          %1326 = vmatprep.subr.mxu0 %v680
          %1327 = vmatpush1.msra.mxu0 %v679
          %1328 = vmatprep.subr.mxu0 %v684
          %1329 = vmatpush1.msra.mxu0 %v683
          %1330 = vmatprep.subr.mxu0 %v688
          %1331 = vmatpush1.msra.mxu0 %v687
          %1332 = vmatprep.subr.mxu0 %v692
          %1333 = vmatpush1.msra.mxu0 %v691
          %1334 = vmatprep.subr.mxu0 %v696
          %1335 = vmatpush1.msra.mxu0 %v695
          %1336 = vmatprep.subr.mxu0 %v700
          %1337 = vmatpush1.msra.mxu0 %v699
          %1338 = vmatprep.subr.mxu0 %v704
          %1339 = vmatpush1.msra.mxu0 %v703
          %1340 = vmatprep.subr.mxu0 %v708
          %1341 = vmatpush1.msra.mxu0 %v707
          %1342 = vmatprep.subr.mxu0 %v712
          %1343 = vmatpush1.msra.mxu0 %v711
          %1344 = vmatprep.subr.mxu0 %v716
          %1345 = vmatpush1.msra.mxu0 %v715
          %1346 = vmatprep.subr.mxu0 %v720
          %1347 = vmatpush1.msra.mxu0 %v719
          %1348 = vmatprep.subr.mxu0 %v724
          %1349 = vmatpush1.msra.mxu0 %v723
          %1350 = vmatprep.subr.mxu0 0.0
          %1351 = vmatpush1.msra.mxu0 0.0
          %1352 = vmatprep.subr.mxu0 0.0
          %1353 = vmatpush1.msra.mxu0 0.0
          %1354 = vmatprep.subr.mxu0 0.0
          %1355 = vmatpush1.msra.mxu0 0.0
          %1356 = vmatprep.subr.mxu0 0.0
          %1357 = vmatpush1.msra.mxu0 0.0
          %1358 = vmatprep.subr.mxu0 0.0
          %1359 = vmatpush1.msra.mxu0 0.0
          %1360 = vmatprep.subr.mxu0 0.0
          %1361 = vmatpush1.msra.mxu0 0.0
          %1362 = vmatprep.subr.mxu0 0.0
          %1363 = vmatpush1.msra.mxu0 0.0
          %1364 = vmatprep.subr.mxu0 0.0
          %1365 = vmatpush1.msra.mxu0 0.0
          %1366 = vmatprep.subr.mxu0 0.0
          %1367 = vmatpush1.msra.mxu0 0.0
          %1368 = vmatprep.subr.mxu0 0.0
          %1369 = vmatpush1.msra.mxu0 0.0
          %1370 = vmatprep.subr.mxu0 0.0
          %1371 = vmatpush1.msra.mxu0 0.0
          %1372 = vmatprep.subr.mxu0 0.0
          %1373 = vmatpush1.msra.mxu0 0.0
          %1374 = vmatprep.subr.mxu0 0.0
          %1375 = vmatpush1.msra.mxu0 0.0
          %1376 = vmatprep.subr.mxu0 0.0
          %1377 = vmatpush1.msra.mxu0 0.0
          %1378 = vmatprep.subr.mxu0 0.0
          %1379 = vmatpush1.msra.mxu0 0.0
          %1380 = vmatprep.subr.mxu0 0.0
          %1381 = vmatpush1.msra.mxu0 0.0
          %1382 = vmatprep.mubr.f32.mxu0 0.0
          %1383 = vmatmul.mubr.f32.gmra.mrb[0].mxu0 %v1242
          %v1384 = vpop.f32.mrb[0].mxu0
          %v1385 = vadd.f32 0.0, %v1384
          %v1386 = vpop.f32.mrb[0].mxu0
          %v1387 = vadd.f32 0.0, %v1386
          %1388 = vdwg.mxu0
          %v1389 = vadd.f32 %v1243, %v1314
          %v1390 = vadd.f32 %v1244, %v1316
          %v1391 = vadd.f32 %v1245, %v1385
          %v1392 = vadd.f32 %v1246, %v1387
          %v1393 = vxor.u32 %v1389, 2147483648
          %v1394 = vmul.f32 %v1393, 1.442695
          %v1395 = vpow.pop %v1394
          %v1396 = vadd.f32 %v1395, 1.0
          %v1397 = vrcp.pop %v1396
          %v1398 = vmul.f32 1.0, %v1397
          %v1399 = vxor.u32 %v1390, 2147483648
          %v1400 = vmul.f32 %v1399, 1.442695
          %v1401 = vpow.pop %v1400
          %v1402 = vadd.f32 %v1401, 1.0
          %v1403 = vrcp.pop %v1402
          %v1404 = vmul.f32 1.0, %v1403
          %v1405 = vtanh.pop %v1391
          %v1406 = vxor.u32 %v1392, 2147483648
          %v1407 = vmul.f32 %v1406, 1.442695
          %v1408 = vpow.pop %v1407
          %v1409 = vadd.f32 %v1408, 1.0
          %v1410 = vrcp.pop %v1409
          %v1411 = vmul.f32 1.0, %v1410
          %v1412 = vmul.f32 %v1404, %v1240
          %v1413 = vmul.f32 %v1398, %v1405
          %v1414 = vadd.f32 %v1412, %v1413
          %v1415 = vtanh.pop %v1414
          %v1416 = vmul.f32 %v1411, %v1415
          %v1417 = vld [vmem:[#allocation2 + $0x80] sm:$0xff]
          %v1418 = vld [vmem:[#allocation2 + $0x88] sm:$0xff]
          %v1419 = vld [vmem:[#allocation2 + $0x90] sm:$0xff]
          %v1420 = vld [vmem:[#allocation2 + $0x98] sm:$0xff]
          %1421 = vmatprep.subr.mxu0 %v662
          %1422 = vmatpush1.msra.mxu0 %v661
          %1423 = vmatprep.subr.mxu0 %v666
          %1424 = vmatpush1.msra.mxu0 %v665
          %1425 = vmatprep.subr.mxu0 %v670
          %1426 = vmatpush1.msra.mxu0 %v669
          %1427 = vmatprep.subr.mxu0 %v674
          %1428 = vmatpush1.msra.mxu0 %v673
          %1429 = vmatprep.subr.mxu0 %v678
          %1430 = vmatpush1.msra.mxu0 %v677
          %1431 = vmatprep.subr.mxu0 %v682
          %1432 = vmatpush1.msra.mxu0 %v681
          %1433 = vmatprep.subr.mxu0 %v686
          %1434 = vmatpush1.msra.mxu0 %v685
          %1435 = vmatprep.subr.mxu0 %v690
          %1436 = vmatpush1.msra.mxu0 %v689
          %1437 = vmatprep.subr.mxu0 %v694
          %1438 = vmatpush1.msra.mxu0 %v693
          %1439 = vmatprep.subr.mxu0 %v698
          %1440 = vmatpush1.msra.mxu0 %v697
          %1441 = vmatprep.subr.mxu0 %v702
          %1442 = vmatpush1.msra.mxu0 %v701
          %1443 = vmatprep.subr.mxu0 %v706
          %1444 = vmatpush1.msra.mxu0 %v705
          %1445 = vmatprep.subr.mxu0 %v710
          %1446 = vmatpush1.msra.mxu0 %v709
          %1447 = vmatprep.subr.mxu0 %v714
          %1448 = vmatpush1.msra.mxu0 %v713
          %1449 = vmatprep.subr.mxu0 %v718
          %1450 = vmatpush1.msra.mxu0 %v717
          %1451 = vmatprep.subr.mxu0 %v722
          %1452 = vmatpush1.msra.mxu0 %v721
          %1453 = vmatprep.subr.mxu0 0.0
          %1454 = vmatpush1.msra.mxu0 0.0
          %1455 = vmatprep.subr.mxu0 0.0
          %1456 = vmatpush1.msra.mxu0 0.0
          %1457 = vmatprep.subr.mxu0 0.0
          %1458 = vmatpush1.msra.mxu0 0.0
          %1459 = vmatprep.subr.mxu0 0.0
          %1460 = vmatpush1.msra.mxu0 0.0
          %1461 = vmatprep.subr.mxu0 0.0
          %1462 = vmatpush1.msra.mxu0 0.0
          %1463 = vmatprep.subr.mxu0 0.0
          %1464 = vmatpush1.msra.mxu0 0.0
          %1465 = vmatprep.subr.mxu0 0.0
          %1466 = vmatpush1.msra.mxu0 0.0
          %1467 = vmatprep.subr.mxu0 0.0
          %1468 = vmatpush1.msra.mxu0 0.0
          %1469 = vmatprep.subr.mxu0 0.0
          %1470 = vmatpush1.msra.mxu0 0.0
          %1471 = vmatprep.subr.mxu0 0.0
          %1472 = vmatpush1.msra.mxu0 0.0
          %1473 = vmatprep.subr.mxu0 0.0
          %1474 = vmatpush1.msra.mxu0 0.0
          %1475 = vmatprep.subr.mxu0 0.0
          %1476 = vmatpush1.msra.mxu0 0.0
          %1477 = vmatprep.subr.mxu0 0.0
          %1478 = vmatpush1.msra.mxu0 0.0
          %1479 = vmatprep.subr.mxu0 0.0
          %1480 = vmatpush1.msra.mxu0 0.0
          %1481 = vmatprep.subr.mxu0 0.0
          %1482 = vmatpush1.msra.mxu0 0.0
          %1483 = vmatprep.subr.mxu0 0.0
          %1484 = vmatpush1.msra.mxu0 0.0
          %1485 = vmatprep.mubr.f32.mxu0 0.0
          %1486 = vmatmul.mubr.f32.gmra.mrb[0].mxu0 %v1416
          %v1487 = vpop.f32.mrb[0].mxu0
          %v1488 = vadd.f32 0.0, %v1487
          %v1489 = vpop.f32.mrb[0].mxu0
          %v1490 = vadd.f32 0.0, %v1489
          %1491 = vdwg.mxu0
          %1492 = vmatprep.subr.mxu0 %v664
          %1493 = vmatpush1.msra.mxu0 %v663
          %1494 = vmatprep.subr.mxu0 %v668
          %1495 = vmatpush1.msra.mxu0 %v667
          %1496 = vmatprep.subr.mxu0 %v672
          %1497 = vmatpush1.msra.mxu0 %v671
          %1498 = vmatprep.subr.mxu0 %v676
          %1499 = vmatpush1.msra.mxu0 %v675
          %1500 = vmatprep.subr.mxu0 %v680
          %1501 = vmatpush1.msra.mxu0 %v679
          %1502 = vmatprep.subr.mxu0 %v684
          %1503 = vmatpush1.msra.mxu0 %v683
          %1504 = vmatprep.subr.mxu0 %v688
          %1505 = vmatpush1.msra.mxu0 %v687
          %1506 = vmatprep.subr.mxu0 %v692
          %1507 = vmatpush1.msra.mxu0 %v691
          %1508 = vmatprep.subr.mxu0 %v696
          %1509 = vmatpush1.msra.mxu0 %v695
          %1510 = vmatprep.subr.mxu0 %v700
          %1511 = vmatpush1.msra.mxu0 %v699
          %1512 = vmatprep.subr.mxu0 %v704
          %1513 = vmatpush1.msra.mxu0 %v703
          %1514 = vmatprep.subr.mxu0 %v708
          %1515 = vmatpush1.msra.mxu0 %v707
          %1516 = vmatprep.subr.mxu0 %v712
          %1517 = vmatpush1.msra.mxu0 %v711
          %1518 = vmatprep.subr.mxu0 %v716
          %1519 = vmatpush1.msra.mxu0 %v715
          %1520 = vmatprep.subr.mxu0 %v720
          %1521 = vmatpush1.msra.mxu0 %v719
          %1522 = vmatprep.subr.mxu0 %v724
          %1523 = vmatpush1.msra.mxu0 %v723
          %1524 = vmatprep.subr.mxu0 0.0
          %1525 = vmatpush1.msra.mxu0 0.0
          %1526 = vmatprep.subr.mxu0 0.0
          %1527 = vmatpush1.msra.mxu0 0.0
          %1528 = vmatprep.subr.mxu0 0.0
          %1529 = vmatpush1.msra.mxu0 0.0
          %1530 = vmatprep.subr.mxu0 0.0
          %1531 = vmatpush1.msra.mxu0 0.0
          %1532 = vmatprep.subr.mxu0 0.0
          %1533 = vmatpush1.msra.mxu0 0.0
          %1534 = vmatprep.subr.mxu0 0.0
          %1535 = vmatpush1.msra.mxu0 0.0
          %1536 = vmatprep.subr.mxu0 0.0
          %1537 = vmatpush1.msra.mxu0 0.0
          %1538 = vmatprep.subr.mxu0 0.0
          %1539 = vmatpush1.msra.mxu0 0.0
          %1540 = vmatprep.subr.mxu0 0.0
          %1541 = vmatpush1.msra.mxu0 0.0
          %1542 = vmatprep.subr.mxu0 0.0
          %1543 = vmatpush1.msra.mxu0 0.0
          %1544 = vmatprep.subr.mxu0 0.0
          %1545 = vmatpush1.msra.mxu0 0.0
          %1546 = vmatprep.subr.mxu0 0.0
          %1547 = vmatpush1.msra.mxu0 0.0
          %1548 = vmatprep.subr.mxu0 0.0
          %1549 = vmatpush1.msra.mxu0 0.0
          %1550 = vmatprep.subr.mxu0 0.0
          %1551 = vmatpush1.msra.mxu0 0.0
          %1552 = vmatprep.subr.mxu0 0.0
          %1553 = vmatpush1.msra.mxu0 0.0
          %1554 = vmatprep.subr.mxu0 0.0
          %1555 = vmatpush1.msra.mxu0 0.0
          %1556 = vmatprep.mubr.f32.mxu0 0.0
          %1557 = vmatmul.mubr.f32.gmra.mrb[0].mxu0 %v1416
          %v1558 = vpop.f32.mrb[0].mxu0
          %v1559 = vadd.f32 0.0, %v1558
          %v1560 = vpop.f32.mrb[0].mxu0
          %v1561 = vadd.f32 0.0, %v1560
          %1562 = vdwg.mxu0
          %v1563 = vadd.f32 %v1417, %v1488
          %v1564 = vadd.f32 %v1418, %v1490
          %v1565 = vadd.f32 %v1419, %v1559
          %v1566 = vadd.f32 %v1420, %v1561
          %v1567 = vxor.u32 %v1563, 2147483648
          %v1568 = vmul.f32 %v1567, 1.442695
          %v1569 = vpow.pop %v1568
          %v1570 = vadd.f32 %v1569, 1.0
          %v1571 = vrcp.pop %v1570
          %v1572 = vmul.f32 1.0, %v1571
          %v1573 = vxor.u32 %v1564, 2147483648
          %v1574 = vmul.f32 %v1573, 1.442695
          %v1575 = vpow.pop %v1574
          %v1576 = vadd.f32 %v1575, 1.0
          %v1577 = vrcp.pop %v1576
          %v1578 = vmul.f32 1.0, %v1577
          %v1579 = vtanh.pop %v1565
          %v1580 = vxor.u32 %v1566, 2147483648
          %v1581 = vmul.f32 %v1580, 1.442695
          %v1582 = vpow.pop %v1581
          %v1583 = vadd.f32 %v1582, 1.0
          %v1584 = vrcp.pop %v1583
          %v1585 = vmul.f32 1.0, %v1584
          %v1586 = vmul.f32 %v1578, %v1414
          %v1587 = vmul.f32 %v1572, %v1579
          %v1588 = vadd.f32 %v1586, %v1587
          %v1589 = vtanh.pop %v1588
          %v1590 = vmul.f32 %v1585, %v1589
          %v1591 = vld [vmem:[#allocation2 + $0xa0] sm:$0xff]
          %v1592 = vld [vmem:[#allocation2 + $0xa8] sm:$0xff]
          %v1593 = vld [vmem:[#allocation2 + $0xb0] sm:$0xff]
          %v1594 = vld [vmem:[#allocation2 + $0xb8] sm:$0xff]
          %1595 = vmatprep.subr.mxu0 %v662
          %1596 = vmatpush1.msra.mxu0 %v661
          %1597 = vmatprep.subr.mxu0 %v666
          %1598 = vmatpush1.msra.mxu0 %v665
          %1599 = vmatprep.subr.mxu0 %v670
          %1600 = vmatpush1.msra.mxu0 %v669
          %1601 = vmatprep.subr.mxu0 %v674
          %1602 = vmatpush1.msra.mxu0 %v673
          %1603 = vmatprep.subr.mxu0 %v678
          %1604 = vmatpush1.msra.mxu0 %v677
          %1605 = vmatprep.subr.mxu0 %v682
          %1606 = vmatpush1.msra.mxu0 %v681
          %1607 = vmatprep.subr.mxu0 %v686
          %1608 = vmatpush1.msra.mxu0 %v685
          %1609 = vmatprep.subr.mxu0 %v690
          %1610 = vmatpush1.msra.mxu0 %v689
          %1611 = vmatprep.subr.mxu0 %v694
          %1612 = vmatpush1.msra.mxu0 %v693
          %1613 = vmatprep.subr.mxu0 %v698
          %1614 = vmatpush1.msra.mxu0 %v697
          %1615 = vmatprep.subr.mxu0 %v702
          %1616 = vmatpush1.msra.mxu0 %v701
          %1617 = vmatprep.subr.mxu0 %v706
          %1618 = vmatpush1.msra.mxu0 %v705
          %1619 = vmatprep.subr.mxu0 %v710
          %1620 = vmatpush1.msra.mxu0 %v709
          %1621 = vmatprep.subr.mxu0 %v714
          %1622 = vmatpush1.msra.mxu0 %v713
          %1623 = vmatprep.subr.mxu0 %v718
          %1624 = vmatpush1.msra.mxu0 %v717
          %1625 = vmatprep.subr.mxu0 %v722
          %1626 = vmatpush1.msra.mxu0 %v721
          %1627 = vmatprep.subr.mxu0 0.0
          %1628 = vmatpush1.msra.mxu0 0.0
          %1629 = vmatprep.subr.mxu0 0.0
          %1630 = vmatpush1.msra.mxu0 0.0
          %1631 = vmatprep.subr.mxu0 0.0
          %1632 = vmatpush1.msra.mxu0 0.0
          %1633 = vmatprep.subr.mxu0 0.0
          %1634 = vmatpush1.msra.mxu0 0.0
          %1635 = vmatprep.subr.mxu0 0.0
          %1636 = vmatpush1.msra.mxu0 0.0
          %1637 = vmatprep.subr.mxu0 0.0
          %1638 = vmatpush1.msra.mxu0 0.0
          %1639 = vmatprep.subr.mxu0 0.0
          %1640 = vmatpush1.msra.mxu0 0.0
          %1641 = vmatprep.subr.mxu0 0.0
          %1642 = vmatpush1.msra.mxu0 0.0
          %1643 = vmatprep.subr.mxu0 0.0
          %1644 = vmatpush1.msra.mxu0 0.0
          %1645 = vmatprep.subr.mxu0 0.0
          %1646 = vmatpush1.msra.mxu0 0.0
          %1647 = vmatprep.subr.mxu0 0.0
          %1648 = vmatpush1.msra.mxu0 0.0
          %1649 = vmatprep.subr.mxu0 0.0
          %1650 = vmatpush1.msra.mxu0 0.0
          %1651 = vmatprep.subr.mxu0 0.0
          %1652 = vmatpush1.msra.mxu0 0.0
          %1653 = vmatprep.subr.mxu0 0.0
          %1654 = vmatpush1.msra.mxu0 0.0
          %1655 = vmatprep.subr.mxu0 0.0
          %1656 = vmatpush1.msra.mxu0 0.0
          %1657 = vmatprep.subr.mxu0 0.0
          %1658 = vmatpush1.msra.mxu0 0.0
          %1659 = vmatprep.mubr.f32.mxu0 0.0
          %1660 = vmatmul.mubr.f32.gmra.mrb[0].mxu0 %v1590
          %v1661 = vpop.f32.mrb[0].mxu0
          %v1662 = vadd.f32 0.0, %v1661
          %v1663 = vpop.f32.mrb[0].mxu0
          %v1664 = vadd.f32 0.0, %v1663
          %1665 = vdwg.mxu0
          %1666 = vmatprep.subr.mxu0 %v664
          %1667 = vmatpush1.msra.mxu0 %v663
          %1668 = vmatprep.subr.mxu0 %v668
          %1669 = vmatpush1.msra.mxu0 %v667
          %1670 = vmatprep.subr.mxu0 %v672
          %1671 = vmatpush1.msra.mxu0 %v671
          %1672 = vmatprep.subr.mxu0 %v676
          %1673 = vmatpush1.msra.mxu0 %v675
          %1674 = vmatprep.subr.mxu0 %v680
          %1675 = vmatpush1.msra.mxu0 %v679
          %1676 = vmatprep.subr.mxu0 %v684
          %1677 = vmatpush1.msra.mxu0 %v683
          %1678 = vmatprep.subr.mxu0 %v688
          %1679 = vmatpush1.msra.mxu0 %v687
          %1680 = vmatprep.subr.mxu0 %v692
          %1681 = vmatpush1.msra.mxu0 %v691
          %1682 = vmatprep.subr.mxu0 %v696
          %1683 = vmatpush1.msra.mxu0 %v695
          %1684 = vmatprep.subr.mxu0 %v700
          %1685 = vmatpush1.msra.mxu0 %v699
          %1686 = vmatprep.subr.mxu0 %v704
          %1687 = vmatpush1.msra.mxu0 %v703
          %1688 = vmatprep.subr.mxu0 %v708
          %1689 = vmatpush1.msra.mxu0 %v707
          %1690 = vmatprep.subr.mxu0 %v712
          %1691 = vmatpush1.msra.mxu0 %v711
          %1692 = vmatprep.subr.mxu0 %v716
          %1693 = vmatpush1.msra.mxu0 %v715
          %1694 = vmatprep.subr.mxu0 %v720
          %1695 = vmatpush1.msra.mxu0 %v719
          %1696 = vmatprep.subr.mxu0 %v724
          %1697 = vmatpush1.msra.mxu0 %v723
          %1698 = vmatprep.subr.mxu0 0.0
          %1699 = vmatpush1.msra.mxu0 0.0
          %1700 = vmatprep.subr.mxu0 0.0
          %1701 = vmatpush1.msra.mxu0 0.0
          %1702 = vmatprep.subr.mxu0 0.0
          %1703 = vmatpush1.msra.mxu0 0.0
          %1704 = vmatprep.subr.mxu0 0.0
          %1705 = vmatpush1.msra.mxu0 0.0
          %1706 = vmatprep.subr.mxu0 0.0
          %1707 = vmatpush1.msra.mxu0 0.0
          %1708 = vmatprep.subr.mxu0 0.0
          %1709 = vmatpush1.msra.mxu0 0.0
          %1710 = vmatprep.subr.mxu0 0.0
          %1711 = vmatpush1.msra.mxu0 0.0
          %1712 = vmatprep.subr.mxu0 0.0
          %1713 = vmatpush1.msra.mxu0 0.0
          %1714 = vmatprep.subr.mxu0 0.0
          %1715 = vmatpush1.msra.mxu0 0.0
          %1716 = vmatprep.subr.mxu0 0.0
          %1717 = vmatpush1.msra.mxu0 0.0
          %1718 = vmatprep.subr.mxu0 0.0
          %1719 = vmatpush1.msra.mxu0 0.0
          %1720 = vmatprep.subr.mxu0 0.0
          %1721 = vmatpush1.msra.mxu0 0.0
          %1722 = vmatprep.subr.mxu0 0.0
          %1723 = vmatpush1.msra.mxu0 0.0
          %1724 = vmatprep.subr.mxu0 0.0
          %1725 = vmatpush1.msra.mxu0 0.0
          %1726 = vmatprep.subr.mxu0 0.0
          %1727 = vmatpush1.msra.mxu0 0.0
          %1728 = vmatprep.subr.mxu0 0.0
          %1729 = vmatpush1.msra.mxu0 0.0
          %1730 = vmatprep.mubr.f32.mxu0 0.0
          %1731 = vmatmul.mubr.f32.gmra.mrb[0].mxu0 %v1590
          %v1732 = vpop.f32.mrb[0].mxu0
          %v1733 = vadd.f32 0.0, %v1732
          %v1734 = vpop.f32.mrb[0].mxu0
          %v1735 = vadd.f32 0.0, %v1734
          %1736 = vdwg.mxu0
          %v1737 = vadd.f32 %v1591, %v1662
          %v1738 = vadd.f32 %v1592, %v1664
          %v1739 = vadd.f32 %v1593, %v1733
          %v1740 = vadd.f32 %v1594, %v1735
          %v1741 = vxor.u32 %v1737, 2147483648
          %v1742 = vmul.f32 %v1741, 1.442695
          %v1743 = vpow.pop %v1742
          %v1744 = vadd.f32 %v1743, 1.0
          %v1745 = vrcp.pop %v1744
          %v1746 = vmul.f32 1.0, %v1745
          %v1747 = vxor.u32 %v1738, 2147483648
          %v1748 = vmul.f32 %v1747, 1.442695
          %v1749 = vpow.pop %v1748
          %v1750 = vadd.f32 %v1749, 1.0
          %v1751 = vrcp.pop %v1750
          %v1752 = vmul.f32 1.0, %v1751
          %v1753 = vtanh.pop %v1739
          %v1754 = vxor.u32 %v1740, 2147483648
          %v1755 = vmul.f32 %v1754, 1.442695
          %v1756 = vpow.pop %v1755
          %v1757 = vadd.f32 %v1756, 1.0
          %v1758 = vrcp.pop %v1757
          %v1759 = vmul.f32 1.0, %v1758
          %v1760 = vmul.f32 %v1752, %v1588
          %v1761 = vmul.f32 %v1746, %v1753
          %v1762 = vadd.f32 %v1760, %v1761
          %v1763 = vtanh.pop %v1762
          %v1764 = vmul.f32 %v1759, %v1763
          %1765 = vst [vmem:[%s264] sm:$0xff] %v1764
        $region52: #{simnet_forward.1} parent=35 // pred_fallthru
          _
        %p1766 = scmp.eq.s32.totalorder %s19, 1
        // Predicated region
        $region53: #{simnet_forward.1} parent=35 // pred_check
          %p1767 = pneg %p1766
        $region54: #{simnet_forward.1} parent=35 // pred_check_branch
          %1769 = sbr.rel (%p1767) target = $region56
        $region55: #{simnet_forward.1} parent=35 // pred_region
          %v1770 = vld [vmem:[#allocation3 + $0x50] sm:$0xff]
          %v1771 = vld [vmem:[#allocation3 + $0x58] sm:$0xff]
          %v1772 = vld [vmem:[%s223] sm:$0xff]
          %v1773 = vld [vmem:[%s223 + $0x8] sm:$0xff]
          %v1774 = vld [vmem:[%s223 + $0x10] sm:$0xff]
          %v1775 = vld [vmem:[%s223 + $0x18] sm:$0xff]
          %v1776 = vld [vmem:[%s223 + $0x20] sm:$0xff]
          %v1777 = vld [vmem:[%s223 + $0x28] sm:$0xff]
          %v1778 = vld [vmem:[%s223 + $0x30] sm:$0xff]
          %v1779 = vld [vmem:[%s223 + $0x38] sm:$0xff]
          %v1780 = vld [vmem:[%s223 + $0x40] sm:$0xff]
          %v1781 = vld [vmem:[%s223 + $0x48] sm:$0xff]
          %v1782 = vld [vmem:[%s223 + $0x50] sm:$0xff]
          %v1783 = vld [vmem:[%s223 + $0x58] sm:$0xff]
          %v1784 = vld [vmem:[%s223 + $0x60] sm:$0xff]
          %v1785 = vld [vmem:[%s223 + $0x68] sm:$0xff]
          %v1786 = vld [vmem:[%s223 + $0x70] sm:$0xff]
          %v1787 = vld [vmem:[%s223 + $0x78] sm:$0xff]
          %v1788 = vld [vmem:[%s223 + $0x80] sm:$0xff]
          %v1789 = vld [vmem:[%s223 + $0x88] sm:$0xff]
          %v1790 = vld [vmem:[%s223 + $0x90] sm:$0xff]
          %v1791 = vld [vmem:[%s223 + $0x98] sm:$0xff]
          %v1792 = vld [vmem:[%s223 + $0xa0] sm:$0xff]
          %v1793 = vld [vmem:[%s223 + $0xa8] sm:$0xff]
          %v1794 = vld [vmem:[%s223 + $0xb0] sm:$0xff]
          %v1795 = vld [vmem:[%s223 + $0xb8] sm:$0xff]
          %v1796 = vld [vmem:[%s223 + $0xc0] sm:$0xff]
          %v1797 = vld [vmem:[%s223 + $0xc8] sm:$0xff]
          %v1798 = vld [vmem:[%s223 + $0xd0] sm:$0xff]
          %v1799 = vld [vmem:[%s223 + $0xd8] sm:$0xff]
          %v1800 = vld [vmem:[%s223 + $0xe0] sm:$0xff]
          %v1801 = vld [vmem:[%s223 + $0xe8] sm:$0xff]
          %v1802 = vld [vmem:[%s223 + $0xf0] sm:$0xff]
          %v1803 = vld [vmem:[%s223 + $0xf8] sm:$0xff]
          %v1804 = vld [vmem:[%s223 + $0x100] sm:$0xff]
          %v1805 = vld [vmem:[%s223 + $0x108] sm:$0xff]
          %v1806 = vld [vmem:[%s223 + $0x110] sm:$0xff]
          %v1807 = vld [vmem:[%s223 + $0x118] sm:$0xff]
          %v1808 = vld [vmem:[%s223 + $0x120] sm:$0xff]
          %v1809 = vld [vmem:[%s223 + $0x128] sm:$0xff]
          %v1810 = vld [vmem:[%s223 + $0x130] sm:$0xff]
          %v1811 = vld [vmem:[%s223 + $0x138] sm:$0xff]
          %v1812 = vld [vmem:[%s223 + $0x140] sm:$0xff]
          %v1813 = vld [vmem:[%s223 + $0x148] sm:$0xff]
          %v1814 = vld [vmem:[%s223 + $0x150] sm:$0xff]
          %v1815 = vld [vmem:[%s223 + $0x158] sm:$0xff]
          %v1816 = vld [vmem:[%s223 + $0x160] sm:$0xff]
          %v1817 = vld [vmem:[%s223 + $0x168] sm:$0xff]
          %v1818 = vld [vmem:[%s223 + $0x170] sm:$0xff]
          %v1819 = vld [vmem:[%s223 + $0x178] sm:$0xff]
          %v1820 = vld [vmem:[%s223 + $0x180] sm:$0xff]
          %v1821 = vld [vmem:[%s223 + $0x188] sm:$0xff]
          %v1822 = vld [vmem:[%s223 + $0x190] sm:$0xff]
          %v1823 = vld [vmem:[%s223 + $0x198] sm:$0xff]
          %v1824 = vld [vmem:[%s223 + $0x1a0] sm:$0xff]
          %v1825 = vld [vmem:[%s223 + $0x1a8] sm:$0xff]
          %v1826 = vld [vmem:[%s223 + $0x1b0] sm:$0xff]
          %v1827 = vld [vmem:[%s223 + $0x1b8] sm:$0xff]
          %v1828 = vld [vmem:[%s223 + $0x1c0] sm:$0xff]
          %v1829 = vld [vmem:[%s223 + $0x1c8] sm:$0xff]
          %v1830 = vld [vmem:[%s223 + $0x1d0] sm:$0xff]
          %v1831 = vld [vmem:[%s223 + $0x1d8] sm:$0xff]
          %v1832 = vld [vmem:[%s223 + $0x1e0] sm:$0xff]
          %v1833 = vld [vmem:[%s223 + $0x1e8] sm:$0xff]
          %v1834 = vld [vmem:[%s223 + $0x1f0] sm:$0xff]
          %v1835 = vld [vmem:[%s223 + $0x1f8] sm:$0xff]
          %v1836 = vld [vmem:[%s223 + $0x200] sm:$0xff]
          %v1837 = vld [vmem:[%s223 + $0x208] sm:$0xff]
          %v1838 = vld [vmem:[%s223 + $0x210] sm:$0xff]
          %v1839 = vld [vmem:[%s223 + $0x218] sm:$0xff]
          %v1840 = vld [vmem:[%s223 + $0x220] sm:$0xff]
          %v1841 = vld [vmem:[%s223 + $0x228] sm:$0xff]
          %v1842 = vld [vmem:[%s223 + $0x230] sm:$0xff]
          %v1843 = vld [vmem:[%s223 + $0x238] sm:$0xff]
          %v1844 = vld [vmem:[%s223 + $0x240] sm:$0xff]
          %v1845 = vld [vmem:[%s223 + $0x248] sm:$0xff]
          %v1846 = vld [vmem:[%s223 + $0x250] sm:$0xff]
          %v1847 = vld [vmem:[%s223 + $0x258] sm:$0xff]
          %v1848 = vld [vmem:[%s223 + $0x260] sm:$0xff]
          %v1849 = vld [vmem:[%s223 + $0x268] sm:$0xff]
          %v1850 = vld [vmem:[%s223 + $0x270] sm:$0xff]
          %v1851 = vld [vmem:[%s223 + $0x278] sm:$0xff]
          %v1852 = vld [vmem:[%s223 + $0x280] sm:$0xff]
          %v1853 = vld [vmem:[%s223 + $0x288] sm:$0xff]
          %v1854 = vld [vmem:[%s223 + $0x290] sm:$0xff]
          %v1855 = vld [vmem:[%s223 + $0x298] sm:$0xff]
          %v1856 = vld [vmem:[%s223 + $0x2a0] sm:$0xff]
          %v1857 = vld [vmem:[%s223 + $0x2a8] sm:$0xff]
          %v1858 = vld [vmem:[%s223 + $0x2b0] sm:$0xff]
          %v1859 = vld [vmem:[%s223 + $0x2b8] sm:$0xff]
          %v1860 = vld [vmem:[%s223 + $0x2c0] sm:$0xff]
          %v1861 = vld [vmem:[%s223 + $0x2c8] sm:$0xff]
          %v1862 = vld [vmem:[%s223 + $0x2d0] sm:$0xff]
          %v1863 = vld [vmem:[%s223 + $0x2d8] sm:$0xff]
          %v1864 = vld [vmem:[%s223 + $0x2e0] sm:$0xff]
          %v1865 = vld [vmem:[%s223 + $0x2e8] sm:$0xff]
          %v1866 = vld [vmem:[%s223 + $0x2f0] sm:$0xff]
          %v1867 = vld [vmem:[%s223 + $0x2f8] sm:$0xff]
          %v1868 = vld [vmem:[%s223 + $0x300] sm:$0xff]
          %v1869 = vld [vmem:[%s223 + $0x308] sm:$0xff]
          %v1870 = vld [vmem:[%s223 + $0x310] sm:$0xff]
          %v1871 = vld [vmem:[%s223 + $0x318] sm:$0xff]
          %v1872 = vld [vmem:[%s223 + $0x320] sm:$0xff]
          %v1873 = vld [vmem:[%s223 + $0x328] sm:$0xff]
          %v1874 = vld [vmem:[%s223 + $0x330] sm:$0xff]
          %v1875 = vld [vmem:[%s223 + $0x338] sm:$0xff]
          %v1876 = vld [vmem:[%s223 + $0x340] sm:$0xff]
          %v1877 = vld [vmem:[%s223 + $0x348] sm:$0xff]
          %v1878 = vld [vmem:[%s223 + $0x350] sm:$0xff]
          %v1879 = vld [vmem:[%s223 + $0x358] sm:$0xff]
          %v1880 = vld [vmem:[%s223 + $0x360] sm:$0xff]
          %v1881 = vld [vmem:[%s223 + $0x368] sm:$0xff]
          %v1882 = vld [vmem:[%s223 + $0x370] sm:$0xff]
          %v1883 = vld [vmem:[%s223 + $0x378] sm:$0xff]
          %v1884 = vld [vmem:[%s223 + $0x380] sm:$0xff]
          %v1885 = vld [vmem:[%s223 + $0x388] sm:$0xff]
          %v1886 = vld [vmem:[%s223 + $0x390] sm:$0xff]
          %v1887 = vld [vmem:[%s223 + $0x398] sm:$0xff]
          %v1888 = vld [vmem:[%s223 + $0x3a0] sm:$0xff]
          %v1889 = vld [vmem:[%s223 + $0x3a8] sm:$0xff]
          %v1890 = vld [vmem:[%s223 + $0x3b0] sm:$0xff]
          %v1891 = vld [vmem:[%s223 + $0x3b8] sm:$0xff]
          %v1892 = vld [vmem:[%s223 + $0x3c0] sm:$0xff]
          %v1893 = vld [vmem:[%s223 + $0x3c8] sm:$0xff]
          %v1894 = vld [vmem:[%s223 + $0x3d0] sm:$0xff]
          %v1895 = vld [vmem:[%s223 + $0x3d8] sm:$0xff]
          %v1896 = vld [vmem:[%s223 + $0x3e0] sm:$0xff]
          %v1897 = vld [vmem:[%s223 + $0x3e8] sm:$0xff]
          %v1898 = vld [vmem:[%s223 + $0x3f0] sm:$0xff]
          %v1899 = vld [vmem:[%s223 + $0x3f8] sm:$0xff]
          %v1900 = vld [vmem:[%s259] sm:$0xf]
          %v1902 = vlaneseq
          %v1903 = vshrl.u32 %v1902, 7
          %v1904 = vsub.s32 0, %v1903
          %v1905 = vrot.slane %v1900, %v1904
          %v1906 = vlaneseq
          %v1907 = vshrl.u32 %v1906, 7
          %v1908 = vsub.s32 1, %v1907
          %v1909 = vrot.slane %v1900, %v1908
          %v1910 = vlaneseq
          %v1911 = vshrl.u32 %v1910, 7
          %v1912 = vsub.s32 2, %v1911
          %v1913 = vrot.slane %v1900, %v1912
          %v1914 = vlaneseq
          %v1915 = vshrl.u32 %v1914, 7
          %v1916 = vsub.s32 3, %v1915
          %v1917 = vrot.slane %v1900, %v1916
          %1922 = vmatprep.subr.mxu0 %v1773
          %1923 = vmatpush1.msra.mxu0 %v1772
          %1924 = vmatprep.subr.mxu0 %v1777
          %1925 = vmatpush1.msra.mxu0 %v1776
          %1926 = vmatprep.subr.mxu0 %v1781
          %1927 = vmatpush1.msra.mxu0 %v1780
          %1928 = vmatprep.subr.mxu0 %v1785
          %1929 = vmatpush1.msra.mxu0 %v1784
          %1930 = vmatprep.subr.mxu0 %v1789
          %1931 = vmatpush1.msra.mxu0 %v1788
          %1932 = vmatprep.subr.mxu0 %v1793
          %1933 = vmatpush1.msra.mxu0 %v1792
          %1934 = vmatprep.subr.mxu0 %v1797
          %1935 = vmatpush1.msra.mxu0 %v1796
          %1936 = vmatprep.subr.mxu0 %v1801
          %1937 = vmatpush1.msra.mxu0 %v1800
          %1938 = vmatprep.subr.mxu0 %v1805
          %1939 = vmatpush1.msra.mxu0 %v1804
          %1940 = vmatprep.subr.mxu0 %v1809
          %1941 = vmatpush1.msra.mxu0 %v1808
          %1942 = vmatprep.subr.mxu0 %v1813
          %1943 = vmatpush1.msra.mxu0 %v1812
          %1944 = vmatprep.subr.mxu0 %v1817
          %1945 = vmatpush1.msra.mxu0 %v1816
          %1946 = vmatprep.subr.mxu0 %v1821
          %1947 = vmatpush1.msra.mxu0 %v1820
          %1948 = vmatprep.subr.mxu0 %v1825
          %1949 = vmatpush1.msra.mxu0 %v1824
          %1950 = vmatprep.subr.mxu0 %v1829
          %1951 = vmatpush1.msra.mxu0 %v1828
          %1952 = vmatprep.subr.mxu0 %v1833
          %1953 = vmatpush1.msra.mxu0 %v1832
          %1954 = vmatprep.subr.mxu0 %v1837
          %1955 = vmatpush1.msra.mxu0 %v1836
          %1956 = vmatprep.subr.mxu0 %v1841
          %1957 = vmatpush1.msra.mxu0 %v1840
          %1958 = vmatprep.subr.mxu0 %v1845
          %1959 = vmatpush1.msra.mxu0 %v1844
          %1960 = vmatprep.subr.mxu0 %v1849
          %1961 = vmatpush1.msra.mxu0 %v1848
          %1962 = vmatprep.subr.mxu0 %v1853
          %1963 = vmatpush1.msra.mxu0 %v1852
          %1964 = vmatprep.subr.mxu0 %v1857
          %1965 = vmatpush1.msra.mxu0 %v1856
          %1966 = vmatprep.subr.mxu0 %v1861
          %1967 = vmatpush1.msra.mxu0 %v1860
          %1968 = vmatprep.subr.mxu0 %v1865
          %1969 = vmatpush1.msra.mxu0 %v1864
          %1970 = vmatprep.subr.mxu0 %v1869
          %1971 = vmatpush1.msra.mxu0 %v1868
          %1972 = vmatprep.subr.mxu0 %v1873
          %1973 = vmatpush1.msra.mxu0 %v1872
          %1974 = vmatprep.subr.mxu0 %v1877
          %1975 = vmatpush1.msra.mxu0 %v1876
          %1976 = vmatprep.subr.mxu0 %v1881
          %1977 = vmatpush1.msra.mxu0 %v1880
          %1978 = vmatprep.subr.mxu0 %v1885
          %1979 = vmatpush1.msra.mxu0 %v1884
          %1980 = vmatprep.subr.mxu0 %v1889
          %1981 = vmatpush1.msra.mxu0 %v1888
          %1982 = vmatprep.subr.mxu0 %v1893
          %1983 = vmatpush1.msra.mxu0 %v1892
          %1984 = vmatprep.subr.mxu0 %v1897
          %1985 = vmatpush1.msra.mxu0 %v1896
          %1986 = vmatprep.mubr.f32.mxu0 %v1771
          %1987 = vmatmul.mubr.f32.gmra.mrb[0].mxu0 %v1770
          %v1988 = vpop.f32.mrb[0].mxu0
          %v1989 = vadd.f32 %v1905, %v1988
          %v1990 = vpop.f32.mrb[0].mxu0
          %v1991 = vadd.f32 %v1909, %v1990
          %1992 = vdwg.mxu0
          %1993 = vmatprep.subr.mxu0 %v1775
          %1994 = vmatpush1.msra.mxu0 %v1774
          %1995 = vmatprep.subr.mxu0 %v1779
          %1996 = vmatpush1.msra.mxu0 %v1778
          %1997 = vmatprep.subr.mxu0 %v1783
          %1998 = vmatpush1.msra.mxu0 %v1782
          %1999 = vmatprep.subr.mxu0 %v1787
          %2000 = vmatpush1.msra.mxu0 %v1786
          %2001 = vmatprep.subr.mxu0 %v1791
          %2002 = vmatpush1.msra.mxu0 %v1790
          %2003 = vmatprep.subr.mxu0 %v1795
          %2004 = vmatpush1.msra.mxu0 %v1794
          %2005 = vmatprep.subr.mxu0 %v1799
          %2006 = vmatpush1.msra.mxu0 %v1798
          %2007 = vmatprep.subr.mxu0 %v1803
          %2008 = vmatpush1.msra.mxu0 %v1802
          %2009 = vmatprep.subr.mxu0 %v1807
          %2010 = vmatpush1.msra.mxu0 %v1806
          %2011 = vmatprep.subr.mxu0 %v1811
          %2012 = vmatpush1.msra.mxu0 %v1810
          %2013 = vmatprep.subr.mxu0 %v1815
          %2014 = vmatpush1.msra.mxu0 %v1814
          %2015 = vmatprep.subr.mxu0 %v1819
          %2016 = vmatpush1.msra.mxu0 %v1818
          %2017 = vmatprep.subr.mxu0 %v1823
          %2018 = vmatpush1.msra.mxu0 %v1822
          %2019 = vmatprep.subr.mxu0 %v1827
          %2020 = vmatpush1.msra.mxu0 %v1826
          %2021 = vmatprep.subr.mxu0 %v1831
          %2022 = vmatpush1.msra.mxu0 %v1830
          %2023 = vmatprep.subr.mxu0 %v1835
          %2024 = vmatpush1.msra.mxu0 %v1834
          %2025 = vmatprep.subr.mxu0 %v1839
          %2026 = vmatpush1.msra.mxu0 %v1838
          %2027 = vmatprep.subr.mxu0 %v1843
          %2028 = vmatpush1.msra.mxu0 %v1842
          %2029 = vmatprep.subr.mxu0 %v1847
          %2030 = vmatpush1.msra.mxu0 %v1846
          %2031 = vmatprep.subr.mxu0 %v1851
          %2032 = vmatpush1.msra.mxu0 %v1850
          %2033 = vmatprep.subr.mxu0 %v1855
          %2034 = vmatpush1.msra.mxu0 %v1854
          %2035 = vmatprep.subr.mxu0 %v1859
          %2036 = vmatpush1.msra.mxu0 %v1858
          %2037 = vmatprep.subr.mxu0 %v1863
          %2038 = vmatpush1.msra.mxu0 %v1862
          %2039 = vmatprep.subr.mxu0 %v1867
          %2040 = vmatpush1.msra.mxu0 %v1866
          %2041 = vmatprep.subr.mxu0 %v1871
          %2042 = vmatpush1.msra.mxu0 %v1870
          %2043 = vmatprep.subr.mxu0 %v1875
          %2044 = vmatpush1.msra.mxu0 %v1874
          %2045 = vmatprep.subr.mxu0 %v1879
          %2046 = vmatpush1.msra.mxu0 %v1878
          %2047 = vmatprep.subr.mxu0 %v1883
          %2048 = vmatpush1.msra.mxu0 %v1882
          %2049 = vmatprep.subr.mxu0 %v1887
          %2050 = vmatpush1.msra.mxu0 %v1886
          %2051 = vmatprep.subr.mxu0 %v1891
          %2052 = vmatpush1.msra.mxu0 %v1890
          %2053 = vmatprep.subr.mxu0 %v1895
          %2054 = vmatpush1.msra.mxu0 %v1894
          %2055 = vmatprep.subr.mxu0 %v1899
          %2056 = vmatpush1.msra.mxu0 %v1898
          %2057 = vmatprep.mubr.f32.mxu0 %v1771
          %2058 = vmatmul.mubr.f32.gmra.mrb[0].mxu0 %v1770
          %v2059 = vpop.f32.mrb[0].mxu0
          %v2060 = vadd.f32 %v1913, %v2059
          %v2061 = vpop.f32.mrb[0].mxu0
          %v2062 = vadd.f32 %v1917, %v2061
          %2063 = vdwg.mxu0
          %v2064 = vxor.u32 %v1989, 2147483648
          %v2065 = vmul.f32 %v2064, 1.442695
          %v2066 = vpow.pop %v2065
          %v2067 = vadd.f32 %v2066, 1.0
          %v2068 = vrcp.pop %v2067
          %v2069 = vmul.f32 1.0, %v2068
          %v2070 = vxor.u32 %v1991, 2147483648
          %v2071 = vmul.f32 %v2070, 1.442695
          %v2072 = vpow.pop %v2071
          %v2073 = vadd.f32 %v2072, 1.0
          %v2074 = vrcp.pop %v2073
          %v2075 = vmul.f32 1.0, %v2074
          %v2076 = vtanh.pop %v2060
          %v2077 = vxor.u32 %v2062, 2147483648
          %v2078 = vmul.f32 %v2077, 1.442695
          %v2079 = vpow.pop %v2078
          %v2080 = vadd.f32 %v2079, 1.0
          %v2081 = vrcp.pop %v2080
          %v2082 = vmul.f32 1.0, %v2081
          %v2083 = vmul.f32 %v2075, 0.0
          %v2084 = vmul.f32 %v2069, %v2076
          %v2085 = vadd.f32 %v2083, %v2084
          %v2086 = vtanh.pop %v2085
          %v2087 = vmul.f32 %v2082, %v2086
          %2088 = vst [vmem:[%s264] sm:$0xff] %v2087
        $region56: #{simnet_forward.1} parent=35 // pred_fallthru
          _
        %p2089 = scmp.lt.s32.totalorder %s19, 1
        %s2090 = scalar_select %p2089, %s19, 1
        %s2091 = smul.addr %s2090, 8
        %s2092 = scalar_lea.vmem %s4, %s2091
        // Predicated region
        $region57: #{simnet_forward.1} parent=35 // pred_check
          %p2093 = pneg %p131
        $region58: #{simnet_forward.1} parent=35 // pred_check_branch
          %2095 = sbr.rel (%p2093) target = $region60
        $region59: #{simnet_forward.1} parent=35 // pred_region
          _
        $region60: #{simnet_forward.1} parent=35 // pred_fallthru
          _
      $region36: #{simnet_forward.1} parent=5 // pred_fallthru
        _
      %p2096 = scmp.le.s32.totalorder 2, %s14
      // Predicated region
      $region61: #{simnet_forward.1} parent=5 // pred_check
        %p2097 = pneg %p2096
      $region62: #{simnet_forward.1} parent=5 // pred_check_branch
        %2099 = sbr.rel (%p2097) target = $region64
      $region63: #{simnet_forward.1} parent=5 // pred_region
        %s2100 = ssub.s32 %s14, 2
        // Predicated region
        $region65: #{simnet_forward.1} parent=63 // pred_check
          %p2101 = pneg %p137
        $region66: #{simnet_forward.1} parent=63 // pred_check_branch
          %2103 = sbr.rel (%p2101) target = $region68
        $region67: #{simnet_forward.1} parent=63 // pred_region
          %p2104 = scmp.lt.s32.totalorder %s20, 1
          %s2105 = scalar_select %p2104, %s20, 1
          %s2106 = smul.addr %s2105, 8
          %s2107 = scalar_lea.vmem %s4, %s2106
        $region68: #{simnet_forward.1} parent=63 // pred_fallthru
          _
      $region64: #{simnet_forward.1} parent=5 // pred_fallthru
        _
    $region6: #{simnet_forward.1} parent=1 // loop_footer
      %s18 = sadd.s32 1, %s14
    $region7: #{simnet_forward.1} parent=1 // loop_footer_branch
      %13 = sbr.rel target = $region3
    $region8: #{simnet_forward.1} parent=1 // loop_exit
      _
    %2108 = vsyncpa [#allocation4], 1
    %s2109 = scalar_lea.sflag [#allocation4], 1
    %2110 = vsyncpa %s2109, 1
    %2111 = vsyncpa [#allocation6], 1
    %s2112 = scalar_lea.sflag [#allocation6], 1
    %2113 = vsyncpa %s2112, 1

</llo_original>
